<compile_context>
chip_gen: v7x
topology: tpu7x:2x2x1
jax: 0.10.0
libtpu: 0.0.40
codegen_flags: <defaults>
</compile_context>

<pallas_src>
import functools
import math
import numpy as np
import jax
import jax.numpy as jnp
from jax.experimental import pallas as pl
from jax.experimental.pallas import tpu as pltpu

N_HEAD = 4
N_FEAT = 32
D_K = N_FEAT // N_HEAD
F32_MIN = float(np.finfo(np.float32).min)


# --------------------------- static host helpers ---------------------------

def positional_encoding_np(length, d_model):
    # espnet PositionalEncoding applied to zeros: 0 * sqrt(d) + pe == pe (eval mode).
    pos = np.arange(length, dtype=np.float32)[:, None]
    div = np.exp(np.arange(0, d_model, 2, dtype=np.float32)
                 * -(math.log(10000.0) / d_model))
    pe = np.zeros((length, d_model), dtype=np.float32)
    pe[:, 0::2] = np.sin(pos * div)
    pe[:, 1::2] = np.cos(pos * div)
    return pe


def _rel_rows(T1, T2):
    # Relative offset m = j - i + (T1 - 1) in [0, T1+T2-2] maps to PE row g(m).
    # Reproduces torch.cat([t_bd, flip(t_bd)[..., 1:]]).as_strided(...) indexing
    # for kmem_after=False.  Requires qlen (T1) <= klen (T2).
    assert T1 <= T2, "rel-shift stays row-aligned only when qlen <= klen"
    m = np.arange(T1 + T2 - 1)
    return np.where(m <= T2 - 1, m, 2 * T2 - 2 - m)


def prepare_params(raw):
    # Pre-transpose & stack all five linears once (host side, outside the hot path).
    W_all = jnp.stack([raw["Wq"].T, raw["Wk"].T, raw["Wv"].T,
                       raw["Wr"].T, raw["Wo"].T], axis=0).astype(jnp.float32)      # (5, F, F)
    b_all = jnp.stack([raw["bq"], raw["bk"], raw["bv_lin"],
                       raw["br"], raw["bo"]], axis=0).reshape(5, 1, -1)
    buv = jnp.stack([raw["bu"].reshape(-1), raw["bv"].reshape(-1)],
                    axis=0).reshape(2, 1, -1)                                      # (2, 1, F)
    return dict(W_all=W_all,
                b_all=b_all.astype(jnp.float32),
                buv=buv.astype(jnp.float32))


# ------------------------------ fused kernel --------------------------------

def _make_fused_kernel(n_seg, H, DK, T1, T2):
    F = H * DK
    scale = 1.0 / math.sqrt(DK)

    def kernel(*refs):
        q_ref = refs[0]
        k_refs = refs[1:1 + n_seg]
        v_refs = refs[1 + n_seg:1 + 2 * n_seg]
        m_ref, pe_ref, w_ref, b_ref, buv_ref, o_ref = refs[1 + 2 * n_seg:]

        q_raw = q_ref[0]                                        # (T1, F)
        if n_seg == 1:
            k_raw = k_refs[0][0]                                # (T2, F)
            v_raw = v_refs[0][0]
        else:                                                   # prev + current block window
            k_raw = jnp.concatenate([kr[0, 0] for kr in k_refs], axis=0)
            v_raw = jnp.concatenate([vr[0, 0] for vr in v_refs], axis=0)

        # Fused projections (all MXU), weights pre-transposed (x @ W^T + b).
        q_proj = jnp.dot(q_raw, w_ref[0], preferred_element_type=jnp.float32) + b_ref[0]
        k_proj = jnp.dot(k_raw, w_ref[1], preferred_element_type=jnp.float32) + b_ref[1]
        v_proj = jnp.dot(v_raw, w_ref[2], preferred_element_type=jnp.float32) + b_ref[2]
        r_rel = jnp.dot(pe_ref[...], w_ref[3], preferred_element_type=jnp.float32) + b_ref[3]

        qu = q_proj + buv_ref[0]                                # single (1,F) row adds
        qv = q_proj + buv_ref[1]
        masked = m_ref[0] == 0                                  # (1, T2)

        ctx_parts = []
        for h in range(H):                                      # unrolled head loop
            lo, hi = h * DK, (h + 1) * DK
            qu_h, qv_h = qu[:, lo:hi], qv[:, lo:hi]
            k_h, v_h, r_h = k_proj[:, lo:hi], v_proj[:, lo:hi], r_rel[:, lo:hi]

            # content score and relative-position score, both on the MXU
            t_ac = jax.lax.dot_general(qu_h, k_h, (((1,), (1,)), ((), ())),
                                       preferred_element_type=jnp.float32)   # (T1, T2)
            t_full = jax.lax.dot_general(qv_h, r_h, (((1,), (1,)), ((), ())),
                                         preferred_element_type=jnp.float32)  # (T1, T1+T2-1)
            # Transformer-XL rel-shift of the score matrix: row i keeps columns
            # [T1-1-i, T1-1-i+T2) -- static slices, no gathered dk-vectors.
            rows = [t_full[i:i + 1, T1 - 1 - i:T1 - 1 - i + T2] for i in range(T1)]
            t_bd = rows[0] if T1 == 1 else jnp.concatenate(rows, axis=0)

            scores = (t_ac + t_bd) * scale
            scores = jnp.where(masked, jnp.float32(F32_MIN), scores)
            smax = jnp.max(scores, axis=-1, keepdims=True)
            e = jnp.exp(scores - smax)
            denom = jnp.sum(e, axis=-1, keepdims=True)
            attn = e * pl.reciprocal(denom, approx=True)        # EUP slot, not VALU
            attn = jnp.where(masked, jnp.float32(0.0), attn)
            # TODO(synk): attention dropout omitted (eval-mode identity).
            ctx_parts.append(jnp.dot(attn, v_h, preferred_element_type=jnp.float32))

        ctx = jnp.concatenate(ctx_parts, axis=-1)               # (T1, F) = transpose+view
        o_ref[0] = jnp.dot(ctx, w_ref[4],
                           preferred_element_type=jnp.float32) + b_ref[4]

    return kernel


# ------------------------------ forward glue ---------------------------------

@functools.partial(jax.jit, static_argnames=("block_len",))
def rel_block_mha_forward(params, query, key, value, mask, *, block_len=0):
    H, DK = N_HEAD, D_K
    B, klen0, F = key.shape
    qlen = query.shape[1]
    mask2d = mask.reshape(B, klen0).astype(jnp.int32)
    query = query.astype(jnp.float32)
    key = key.astype(jnp.float32)
    value = value.astype(jnp.float32)

    # TODO(synk): key_memory / key_memory_mask / kmem_after paths not implemented.
    if block_len > 0:
        assert qlen == klen0, "query/key length must match for block processing"
        blen = block_len
        plen = (blen - klen0 % blen) % blen
        nblk = (klen0 + plen) // blen
        Bp, T1, T2 = B * nblk, blen, 2 * blen

        q_in = jnp.pad(query, ((0, 0), (0, plen), (0, 0))).reshape(Bp, T1, F)
        # single zero-padded copy; overlapping windows selected via BlockSpecs
        k_in = jnp.pad(key, ((0, 0), (blen, plen), (0, 0))).reshape(B, nblk + 1, blen, F)
        v_in = jnp.pad(value, ((0, 0), (blen, plen), (0, 0))).reshape(B, nblk + 1, blen, F)
        widx = np.arange(nblk)[:, None] * blen + np.arange(2 * blen)[None, :]
        m_win = jnp.pad(mask2d, ((0, 0), (blen, plen)))[:, widx].reshape(Bp, 1, T2)

        n_seg = 2
        kv_ops = [k_in, k_in, v_in, v_in]
        kv_specs = [
            pl.BlockSpec((1, 1, blen, F), lambda b: (b // nblk, b % nblk, 0, 0)),
            pl.BlockSpec((1, 1, blen, F), lambda b: (b // nblk, b % nblk + 1, 0, 0)),
            pl.BlockSpec((1, 1, blen, F), lambda b: (b // nblk, b % nblk, 0, 0)),
            pl.BlockSpec((1, 1, blen, F), lambda b: (b // nblk, b % nblk + 1, 0, 0)),
        ]
    else:
        Bp, T1, T2 = B, qlen, klen0
        q_in = query
        m_win = mask2d.reshape(Bp, 1, T2)
        n_seg = 1
        kv_ops = [key, value]
        kv_specs = [pl.BlockSpec((1, T2, F), lambda b: (b, 0, 0)),
                    pl.BlockSpec((1, T2, F), lambda b: (b, 0, 0))]

    L = T1 + T2 - 1
    # Static host-side gather of PE rows -> (L, F) relative table (no T1 replication).
    pe_rel = jnp.asarray(positional_encoding_np(T2, F)[_rel_rows(T1, T2)])

    kernel = _make_fused_kernel(n_seg, H, DK, T1, T2)
    out = pl.pallas_call(
        kernel,
        out_shape=jax.ShapeDtypeStruct((Bp, T1, F), jnp.float32),
        grid=(Bp,),
        in_specs=[pl.BlockSpec((1, T1, F), lambda b: (b, 0, 0))]
                 + kv_specs
                 + [pl.BlockSpec((1, 1, T2), lambda b: (b, 0, 0)),
                    pl.BlockSpec((L, F), lambda b: (0, 0)),
                    pl.BlockSpec((5, F, F), lambda b: (0, 0, 0)),
                    pl.BlockSpec((5, 1, F), lambda b: (0, 0, 0)),
                    pl.BlockSpec((2, 1, F), lambda b: (0, 0, 0))],
        out_specs=pl.BlockSpec((1, T1, F), lambda b: (b, 0, 0)),
        compiler_params=pltpu.CompilerParams(dimension_semantics=("parallel",)),
    )(q_in, *kv_ops, m_win, pe_rel,
      params["W_all"], params["b_all"], params["buv"])

    return out.reshape(B, -1, F)[:, :qlen, :]


# ----------------------- pure-JAX reference (for checking) -------------------

def _rel_shift_cols(T1, T2):
    g = _rel_rows(T1, T2)
    rel = np.arange(T2)[None, :] - np.arange(T1)[:, None] + (T1 - 1)
    return g[rel]                                              # (T1, T2)


def reference_forward(raw, query, key, value, mask, block_len=0):
    h, dk = N_HEAD, D_K
    B, klen0, F = key.shape
    qlen = query.shape[1]
    lin = lambda x, W, b: jnp.dot(x, W.T) + b
    mask2d = mask.reshape(B, klen0).astype(jnp.int32)
    if block_len > 0:
        blen = block_len
        plen = (blen - klen0 % blen) % blen
        nblk = (klen0 + plen) // blen
        widx = np.arange(nblk)[:, None] * blen + np.arange(2 * blen)[None, :]
        q = lin(query, raw["Wq"], raw["bq"])
        q = jnp.pad(q, ((0, 0), (0, plen), (0, 0))).reshape(B * nblk, blen, h, dk)
        k = lin(key, raw["Wk"], raw["bk"])
        k = jnp.pad(k, ((0, 0), (blen, plen), (0, 0)))[:, widx].reshape(B * nblk, 2 * blen, h, dk)
        v = lin(value, raw["Wv"], raw["bv_lin"])
        v = jnp.pad(v, ((0, 0), (blen, plen), (0, 0)))[:, widx].reshape(B * nblk, 2 * blen, h, dk)
        m = jnp.pad(mask2d, ((0, 0), (blen, plen)))[:, widx].reshape(B * nblk, 2 * blen)
        T1, T2 = blen, 2 * blen
    else:
        q = lin(query, raw["Wq"], raw["bq"]).reshape(B, qlen, h, dk)
        k = lin(key, raw["Wk"], raw["bk"]).reshape(B, klen0, h, dk)
        v = lin(value, raw["Wv"], raw["bv_lin"]).reshape(B, klen0, h, dk)
        m = mask2d
        T1, T2 = qlen, klen0
    pe = jnp.asarray(positional_encoding_np(T2, F))
    r = lin(pe, raw["Wr"], raw["br"]).reshape(T2, h, dk)
    qh = jnp.transpose(q, (0, 2, 1, 3))
    kh = jnp.transpose(k, (0, 2, 1, 3))
    vh = jnp.transpose(v, (0, 2, 1, 3))
    rh = jnp.transpose(r, (1, 0, 2))
    r2 = rh[:, _rel_shift_cols(T1, T2), :]                     # (h, T1, T2, dk)
    bu = raw["bu"].reshape(1, h, 1, dk)
    bv = raw["bv"].reshape(1, h, 1, dk)
    t_ac = jnp.einsum('bhid,bhjd->bhij', qh + bu, kh)
    t_bd = jnp.einsum('bhid,hijd->bhij', qh + bv, r2)
    scores = (t_ac + t_bd) / math.sqrt(dk)
    mb = (m[:, None, None, :] == 0)
    scores = jnp.where(mb, jnp.float32(F32_MIN), scores)
    attn = jax.nn.softmax(scores, axis=-1)
    attn = jnp.where(mb, jnp.float32(0.0), attn)
    x = jnp.einsum('bhij,bhjd->bhid', attn, vh)
    x = jnp.transpose(x, (0, 2, 1, 3)).reshape(B, -1, h * dk)
    return lin(x, raw["Wo"], raw["bo"])[:, :qlen, :]


# ------------------------------------ demo -----------------------------------

if __name__ == "__main__":
    root = jax.random.PRNGKey(0)
    ks = jax.random.split(root, 10)

    def init_linear(kkey, fin, fout):
        kw, kb = jax.random.split(kkey)
        bound = 1.0 / math.sqrt(fin)
        W = jax.random.uniform(kw, (fout, fin), jnp.float32, -bound, bound)
        b = jax.random.uniform(kb, (fout,), jnp.float32, -bound, bound)
        return W, b

    Wq, bq = init_linear(ks[0], N_FEAT, N_FEAT)
    Wk, bk = init_linear(ks[1], N_FEAT, N_FEAT)
    Wv, bv_lin = init_linear(ks[2], N_FEAT, N_FEAT)
    Wr, br = init_linear(ks[3], N_FEAT, N_FEAT)
    Wo, bo = init_linear(ks[4], N_FEAT, N_FEAT)
    bu = jax.random.uniform(ks[5], (N_HEAD, D_K), jnp.float32, 0.0, 1.0)
    bv = jax.random.uniform(ks[6], (N_HEAD, D_K), jnp.float32, 0.0, 1.0)
    raw = dict(Wq=Wq, bq=bq, Wk=Wk, bk=bk, Wv=Wv, bv_lin=bv_lin,
               Wr=Wr, br=br, Wo=Wo, bo=bo, bu=bu, bv=bv)
    params = prepare_params(raw)

    B, T = 2, 8
    q_in = jax.random.normal(ks[7], (B, T, N_FEAT), jnp.float32)
    k_in = jax.random.normal(ks[8], (B, T, N_FEAT), jnp.float32)
    v_in = jax.random.normal(ks[9], (B, T, N_FEAT), jnp.float32)
    lengths = jnp.array([8, 6], dtype=jnp.int32)
    mask = (jnp.arange(T)[None, None, :] < lengths[:, None, None]).astype(jnp.int32)

    out_full = rel_block_mha_forward(params, q_in, k_in, v_in, mask, block_len=0)
    out_block = rel_block_mha_forward(params, q_in, k_in, v_in, mask, block_len=4)
    jax.block_until_ready((out_full, out_block))
    assert out_full.shape == (B, T, N_FEAT)
    assert out_block.shape == (B, T, N_FEAT)
    assert bool(jnp.all(jnp.isfinite(out_full)))
    assert bool(jnp.all(jnp.isfinite(out_block)))

    with jax.default_matmul_precision("highest"):
        ref_full = reference_forward(raw, q_in, k_in, v_in, mask, block_len=0)
        ref_block = reference_forward(raw, q_in, k_in, v_in, mask, block_len=4)
    err_full = float(jnp.max(jnp.abs(out_full - ref_full)))
    err_block = float(jnp.max(jnp.abs(out_block - ref_block)))
    assert err_full < 3e-2 and err_block < 3e-2, (err_full, err_block)

    print("KERNEL_OK")
</pallas_src>

<mosaic_0001>
module attributes {stable_mosaic.version = 11 : i64} {
  func.func @kernel(%arg0: i32, %arg1: memref<1x8x32xf32, #tpu.memory_space<vmem>>, %arg2: memref<1x8x32xf32, #tpu.memory_space<vmem>>, %arg3: memref<1x8x32xf32, #tpu.memory_space<vmem>>, %arg4: memref<1x1x8xi32, #tpu.memory_space<vmem>>, %arg5: memref<15x32xf32, #tpu.memory_space<vmem>>, %arg6: memref<5x32x32xf32, #tpu.memory_space<vmem>>, %arg7: memref<5x1x32xf32, #tpu.memory_space<vmem>>, %arg8: memref<2x1x32xf32, #tpu.memory_space<vmem>>, %arg9: memref<1x8x32xf32, #tpu.memory_space<vmem>>) attributes {dimension_semantics = [#tpu.dimension_semantics<parallel>], iteration_bounds = array<i64: 2>, scalar_prefetch = 0 : i64, scratch_operands = 0 : i64, tpu.core_type = #tpu.core_type<tc>, window_params = [{transform_indices = @transform_0, window_bounds = array<i64: 1, 8, 32>}, {transform_indices = @transform_1, window_bounds = array<i64: 1, 8, 32>}, {transform_indices = @transform_2, window_bounds = array<i64: 1, 8, 32>}, {transform_indices = @transform_3, window_bounds = array<i64: 1, 1, 8>}, {pipeline_mode = #tpu.pipeline_mode<synchronous>, transform_indices = @transform_4, window_bounds = array<i64: 15, 32>}, {pipeline_mode = #tpu.pipeline_mode<synchronous>, transform_indices = @transform_5, window_bounds = array<i64: 5, 32, 32>}, {pipeline_mode = #tpu.pipeline_mode<synchronous>, transform_indices = @transform_6, window_bounds = array<i64: 5, 1, 32>}, {pipeline_mode = #tpu.pipeline_mode<synchronous>, transform_indices = @transform_7, window_bounds = array<i64: 2, 1, 32>}, {transform_indices = @transform_8, window_bounds = array<i64: 1, 8, 32>}]} {
    %c0 = arith.constant 0 : index
    %c0_0 = arith.constant 0 : index
    %c0_1 = arith.constant 0 : index
    %0 = vector.load %arg1[%c0, %c0_0, %c0_1] : memref<1x8x32xf32, #tpu.memory_space<vmem>>, vector<1x8x32xf32>
    %1 = vector.shape_cast %0 : vector<1x8x32xf32> to vector<8x32xf32>
    %c0_2 = arith.constant 0 : index
    %c0_3 = arith.constant 0 : index
    %c0_4 = arith.constant 0 : index
    %2 = vector.load %arg2[%c0_2, %c0_3, %c0_4] : memref<1x8x32xf32, #tpu.memory_space<vmem>>, vector<1x8x32xf32>
    %3 = vector.shape_cast %2 : vector<1x8x32xf32> to vector<8x32xf32>
    %c0_5 = arith.constant 0 : index
    %c0_6 = arith.constant 0 : index
    %c0_7 = arith.constant 0 : index
    %4 = vector.load %arg3[%c0_5, %c0_6, %c0_7] : memref<1x8x32xf32, #tpu.memory_space<vmem>>, vector<1x8x32xf32>
    %5 = vector.shape_cast %4 : vector<1x8x32xf32> to vector<8x32xf32>
    %c0_8 = arith.constant 0 : index
    %c0_9 = arith.constant 0 : index
    %c0_10 = arith.constant 0 : index
    %6 = vector.load %arg6[%c0_8, %c0_9, %c0_10] : memref<5x32x32xf32, #tpu.memory_space<vmem>>, vector<1x32x32xf32>
    %7 = vector.shape_cast %6 : vector<1x32x32xf32> to vector<32x32xf32>
    %cst = arith.constant dense<0.000000e+00> : vector<8x32xf32>
    %8 = tpu.matmul %1, %7, %cst {dimension_numbers = #tpu.dot_dimension_numbers<[1], [0], [0], [1], [0, 0, 1, 1], [], []>} : vector<8x32xf32>, vector<32x32xf32>, vector<8x32xf32> -> vector<8x32xf32>
    %c0_11 = arith.constant 0 : index
    %c0_12 = arith.constant 0 : index
    %c0_13 = arith.constant 0 : index
    %9 = vector.load %arg7[%c0_11, %c0_12, %c0_13] : memref<5x1x32xf32, #tpu.memory_space<vmem>>, vector<1x1x32xf32>
    %10 = vector.shape_cast %9 : vector<1x1x32xf32> to vector<1x32xf32>
    %11 = vector.broadcast %10 : vector<1x32xf32> to vector<8x32xf32>
    %12 = arith.addf %8, %11 : vector<8x32xf32>
    %c1 = arith.constant 1 : index
    %c0_14 = arith.constant 0 : index
    %c0_15 = arith.constant 0 : index
    %13 = vector.load %arg6[%c1, %c0_14, %c0_15] : memref<5x32x32xf32, #tpu.memory_space<vmem>>, vector<1x32x32xf32>
    %14 = vector.shape_cast %13 : vector<1x32x32xf32> to vector<32x32xf32>
    %cst_16 = arith.constant dense<0.000000e+00> : vector<8x32xf32>
    %15 = tpu.matmul %3, %14, %cst_16 {dimension_numbers = #tpu.dot_dimension_numbers<[1], [0], [0], [1], [0, 0, 1, 1], [], []>} : vector<8x32xf32>, vector<32x32xf32>, vector<8x32xf32> -> vector<8x32xf32>
    %c1_17 = arith.constant 1 : index
    %c0_18 = arith.constant 0 : index
    %c0_19 = arith.constant 0 : index
    %16 = vector.load %arg7[%c1_17, %c0_18, %c0_19] : memref<5x1x32xf32, #tpu.memory_space<vmem>>, vector<1x1x32xf32>
    %17 = vector.shape_cast %16 : vector<1x1x32xf32> to vector<1x32xf32>
    %18 = vector.broadcast %17 : vector<1x32xf32> to vector<8x32xf32>
    %19 = arith.addf %15, %18 : vector<8x32xf32>
    %c2 = arith.constant 2 : index
    %c0_20 = arith.constant 0 : index
    %c0_21 = arith.constant 0 : index
    %20 = vector.load %arg6[%c2, %c0_20, %c0_21] : memref<5x32x32xf32, #tpu.memory_space<vmem>>, vector<1x32x32xf32>
    %21 = vector.shape_cast %20 : vector<1x32x32xf32> to vector<32x32xf32>
    %cst_22 = arith.constant dense<0.000000e+00> : vector<8x32xf32>
    %22 = tpu.matmul %5, %21, %cst_22 {dimension_numbers = #tpu.dot_dimension_numbers<[1], [0], [0], [1], [0, 0, 1, 1], [], []>} : vector<8x32xf32>, vector<32x32xf32>, vector<8x32xf32> -> vector<8x32xf32>
    %c2_23 = arith.constant 2 : index
    %c0_24 = arith.constant 0 : index
    %c0_25 = arith.constant 0 : index
    %23 = vector.load %arg7[%c2_23, %c0_24, %c0_25] : memref<5x1x32xf32, #tpu.memory_space<vmem>>, vector<1x1x32xf32>
    %24 = vector.shape_cast %23 : vector<1x1x32xf32> to vector<1x32xf32>
    %25 = vector.broadcast %24 : vector<1x32xf32> to vector<8x32xf32>
    %26 = arith.addf %22, %25 : vector<8x32xf32>
    %c0_26 = arith.constant 0 : index
    %c0_27 = arith.constant 0 : index
    %27 = vector.load %arg5[%c0_26, %c0_27] : memref<15x32xf32, #tpu.memory_space<vmem>>, vector<15x32xf32>
    %c3 = arith.constant 3 : index
    %c0_28 = arith.constant 0 : index
    %c0_29 = arith.constant 0 : index
    %28 = vector.load %arg6[%c3, %c0_28, %c0_29] : memref<5x32x32xf32, #tpu.memory_space<vmem>>, vector<1x32x32xf32>
    %29 = vector.shape_cast %28 : vector<1x32x32xf32> to vector<32x32xf32>
    %cst_30 = arith.constant dense<0.000000e+00> : vector<15x32xf32>
    %30 = tpu.matmul %27, %29, %cst_30 {dimension_numbers = #tpu.dot_dimension_numbers<[1], [0], [0], [1], [0, 0, 1, 1], [], []>} : vector<15x32xf32>, vector<32x32xf32>, vector<15x32xf32> -> vector<15x32xf32>
    %c3_31 = arith.constant 3 : index
    %c0_32 = arith.constant 0 : index
    %c0_33 = arith.constant 0 : index
    %31 = vector.load %arg7[%c3_31, %c0_32, %c0_33] : memref<5x1x32xf32, #tpu.memory_space<vmem>>, vector<1x1x32xf32>
    %32 = vector.shape_cast %31 : vector<1x1x32xf32> to vector<1x32xf32>
    %33 = vector.broadcast %32 : vector<1x32xf32> to vector<15x32xf32>
    %34 = arith.addf %30, %33 : vector<15x32xf32>
    %c0_34 = arith.constant 0 : index
    %c0_35 = arith.constant 0 : index
    %c0_36 = arith.constant 0 : index
    %35 = vector.load %arg8[%c0_34, %c0_35, %c0_36] : memref<2x1x32xf32, #tpu.memory_space<vmem>>, vector<1x1x32xf32>
    %36 = vector.shape_cast %35 : vector<1x1x32xf32> to vector<1x32xf32>
    %37 = vector.broadcast %36 : vector<1x32xf32> to vector<8x32xf32>
    %38 = arith.addf %12, %37 : vector<8x32xf32>
    %c1_37 = arith.constant 1 : index
    %c0_38 = arith.constant 0 : index
    %c0_39 = arith.constant 0 : index
    %39 = vector.load %arg8[%c1_37, %c0_38, %c0_39] : memref<2x1x32xf32, #tpu.memory_space<vmem>>, vector<1x1x32xf32>
    %40 = vector.shape_cast %39 : vector<1x1x32xf32> to vector<1x32xf32>
    %41 = vector.broadcast %40 : vector<1x32xf32> to vector<8x32xf32>
    %42 = arith.addf %12, %41 : vector<8x32xf32>
    %c0_40 = arith.constant 0 : index
    %c0_41 = arith.constant 0 : index
    %c0_42 = arith.constant 0 : index
    %43 = vector.load %arg4[%c0_40, %c0_41, %c0_42] : memref<1x1x8xi32, #tpu.memory_space<vmem>>, vector<1x1x8xi32>
    %44 = vector.shape_cast %43 : vector<1x1x8xi32> to vector<1x8xi32>
    %c0_i32 = arith.constant 0 : i32
    %45 = vector.broadcast %c0_i32 : i32 to vector<1x8xi32>
    %46 = arith.cmpi eq, %44, %45 : vector<1x8xi32>
    %47 = vector.extract_strided_slice %38 {offsets = [0, 0], sizes = [8, 8], strides = [1, 1]} : vector<8x32xf32> to vector<8x8xf32>
    %48 = vector.extract_strided_slice %42 {offsets = [0, 0], sizes = [8, 8], strides = [1, 1]} : vector<8x32xf32> to vector<8x8xf32>
    %49 = vector.extract_strided_slice %19 {offsets = [0, 0], sizes = [8, 8], strides = [1, 1]} : vector<8x32xf32> to vector<8x8xf32>
    %50 = vector.extract_strided_slice %26 {offsets = [0, 0], sizes = [8, 8], strides = [1, 1]} : vector<8x32xf32> to vector<8x8xf32>
    %51 = vector.extract_strided_slice %34 {offsets = [0, 0], sizes = [15, 8], strides = [1, 1]} : vector<15x32xf32> to vector<15x8xf32>
    %cst_43 = arith.constant dense<0.000000e+00> : vector<8x8xf32>
    %52 = tpu.matmul %47, %49, %cst_43 {dimension_numbers = #tpu.dot_dimension_numbers<[1], [1], [0], [0], [0, 0, 1, 0], [], []>} : vector<8x8xf32>, vector<8x8xf32>, vector<8x8xf32> -> vector<8x8xf32>
    %cst_44 = arith.constant dense<0.000000e+00> : vector<8x15xf32>
    %53 = tpu.matmul %48, %51, %cst_44 {dimension_numbers = #tpu.dot_dimension_numbers<[1], [1], [0], [0], [0, 0, 1, 0], [], []>} : vector<8x8xf32>, vector<15x8xf32>, vector<8x15xf32> -> vector<8x15xf32>
    %54 = vector.extract_strided_slice %53 {offsets = [0, 7], sizes = [1, 8], strides = [1, 1]} : vector<8x15xf32> to vector<1x8xf32>
    %55 = vector.extract_strided_slice %53 {offsets = [1, 6], sizes = [1, 8], strides = [1, 1]} : vector<8x15xf32> to vector<1x8xf32>
    %56 = vector.extract_strided_slice %53 {offsets = [2, 5], sizes = [1, 8], strides = [1, 1]} : vector<8x15xf32> to vector<1x8xf32>
    %57 = vector.extract_strided_slice %53 {offsets = [3, 4], sizes = [1, 8], strides = [1, 1]} : vector<8x15xf32> to vector<1x8xf32>
    %58 = vector.extract_strided_slice %53 {offsets = [4, 3], sizes = [1, 8], strides = [1, 1]} : vector<8x15xf32> to vector<1x8xf32>
    %59 = vector.extract_strided_slice %53 {offsets = [5, 2], sizes = [1, 8], strides = [1, 1]} : vector<8x15xf32> to vector<1x8xf32>
    %60 = vector.extract_strided_slice %53 {offsets = [6, 1], sizes = [1, 8], strides = [1, 1]} : vector<8x15xf32> to vector<1x8xf32>
    %61 = vector.extract_strided_slice %53 {offsets = [7, 0], sizes = [1, 8], strides = [1, 1]} : vector<8x15xf32> to vector<1x8xf32>
    %62 = tpu.concatenate %54, %55, %56, %57, %58, %59, %60, %61 in 0 : vector<1x8xf32>, vector<1x8xf32>, vector<1x8xf32>, vector<1x8xf32>, vector<1x8xf32>, vector<1x8xf32>, vector<1x8xf32>, vector<1x8xf32> -> vector<8x8xf32>
    %63 = arith.addf %52, %62 : vector<8x8xf32>
    %cst_45 = arith.constant 0.353553385 : f32
    %64 = vector.broadcast %cst_45 : f32 to vector<8x8xf32>
    %65 = arith.mulf %63, %64 : vector<8x8xf32>
    %cst_46 = arith.constant -3.40282347E+38 : f32
    %66 = vector.shape_cast %46 : vector<1x8xi1> to vector<1x8xi1>
    %67 = vector.broadcast %66 : vector<1x8xi1> to vector<8x8xi1>
    %68 = vector.broadcast %cst_46 : f32 to vector<8x8xf32>
    %69 = arith.select %67, %68, %65 : vector<8x8xi1>, vector<8x8xf32>
    %cst_47 = arith.constant dense<0xFF800000> : vector<8xf32>
    %70 = vector.multi_reduction <maximumf>, %69, %cst_47 [1] : vector<8x8xf32> to vector<8xf32>
    %71 = vector.shape_cast %70 : vector<8xf32> to vector<8x1xf32>
    %72 = vector.broadcast %71 : vector<8x1xf32> to vector<8x8xf32>
    %73 = arith.subf %69, %72 : vector<8x8xf32>
    %74 = math.exp %73 : vector<8x8xf32>
    %cst_48 = arith.constant dense<0.000000e+00> : vector<8xf32>
    %75 = vector.multi_reduction <add>, %74, %cst_48 [1] : vector<8x8xf32> to vector<8xf32>
    %76 = vector.shape_cast %75 : vector<8xf32> to vector<8x1xf32>
    %77 = tpu.reciprocal %76 {approx = true} : vector<8x1xf32> -> vector<8x1xf32>
    %78 = vector.broadcast %77 : vector<8x1xf32> to vector<8x8xf32>
    %79 = arith.mulf %74, %78 : vector<8x8xf32>
    %cst_49 = arith.constant 0.000000e+00 : f32
    %80 = vector.shape_cast %46 : vector<1x8xi1> to vector<1x8xi1>
    %81 = vector.broadcast %80 : vector<1x8xi1> to vector<8x8xi1>
    %82 = vector.broadcast %cst_49 : f32 to vector<8x8xf32>
    %83 = arith.select %81, %82, %79 : vector<8x8xi1>, vector<8x8xf32>
    %cst_50 = arith.constant dense<0.000000e+00> : vector<8x8xf32>
    %84 = tpu.matmul %83, %50, %cst_50 {dimension_numbers = #tpu.dot_dimension_numbers<[1], [0], [0], [1], [0, 0, 1, 1], [], []>} : vector<8x8xf32>, vector<8x8xf32>, vector<8x8xf32> -> vector<8x8xf32>
    %85 = vector.extract_strided_slice %38 {offsets = [0, 8], sizes = [8, 8], strides = [1, 1]} : vector<8x32xf32> to vector<8x8xf32>
    %86 = vector.extract_strided_slice %42 {offsets = [0, 8], sizes = [8, 8], strides = [1, 1]} : vector<8x32xf32> to vector<8x8xf32>
    %87 = vector.extract_strided_slice %19 {offsets = [0, 8], sizes = [8, 8], strides = [1, 1]} : vector<8x32xf32> to vector<8x8xf32>
    %88 = vector.extract_strided_slice %26 {offsets = [0, 8], sizes = [8, 8], strides = [1, 1]} : vector<8x32xf32> to vector<8x8xf32>
    %89 = vector.extract_strided_slice %34 {offsets = [0, 8], sizes = [15, 8], strides = [1, 1]} : vector<15x32xf32> to vector<15x8xf32>
    %cst_51 = arith.constant dense<0.000000e+00> : vector<8x8xf32>
    %90 = tpu.matmul %85, %87, %cst_51 {dimension_numbers = #tpu.dot_dimension_numbers<[1], [1], [0], [0], [0, 0, 1, 0], [], []>} : vector<8x8xf32>, vector<8x8xf32>, vector<8x8xf32> -> vector<8x8xf32>
    %cst_52 = arith.constant dense<0.000000e+00> : vector<8x15xf32>
    %91 = tpu.matmul %86, %89, %cst_52 {dimension_numbers = #tpu.dot_dimension_numbers<[1], [1], [0], [0], [0, 0, 1, 0], [], []>} : vector<8x8xf32>, vector<15x8xf32>, vector<8x15xf32> -> vector<8x15xf32>
    %92 = vector.extract_strided_slice %91 {offsets = [0, 7], sizes = [1, 8], strides = [1, 1]} : vector<8x15xf32> to vector<1x8xf32>
    %93 = vector.extract_strided_slice %91 {offsets = [1, 6], sizes = [1, 8], strides = [1, 1]} : vector<8x15xf32> to vector<1x8xf32>
    %94 = vector.extract_strided_slice %91 {offsets = [2, 5], sizes = [1, 8], strides = [1, 1]} : vector<8x15xf32> to vector<1x8xf32>
    %95 = vector.extract_strided_slice %91 {offsets = [3, 4], sizes = [1, 8], strides = [1, 1]} : vector<8x15xf32> to vector<1x8xf32>
    %96 = vector.extract_strided_slice %91 {offsets = [4, 3], sizes = [1, 8], strides = [1, 1]} : vector<8x15xf32> to vector<1x8xf32>
    %97 = vector.extract_strided_slice %91 {offsets = [5, 2], sizes = [1, 8], strides = [1, 1]} : vector<8x15xf32> to vector<1x8xf32>
    %98 = vector.extract_strided_slice %91 {offsets = [6, 1], sizes = [1, 8], strides = [1, 1]} : vector<8x15xf32> to vector<1x8xf32>
    %99 = vector.extract_strided_slice %91 {offsets = [7, 0], sizes = [1, 8], strides = [1, 1]} : vector<8x15xf32> to vector<1x8xf32>
    %100 = tpu.concatenate %92, %93, %94, %95, %96, %97, %98, %99 in 0 : vector<1x8xf32>, vector<1x8xf32>, vector<1x8xf32>, vector<1x8xf32>, vector<1x8xf32>, vector<1x8xf32>, vector<1x8xf32>, vector<1x8xf32> -> vector<8x8xf32>
    %101 = arith.addf %90, %100 : vector<8x8xf32>
    %cst_53 = arith.constant 0.353553385 : f32
    %102 = vector.broadcast %cst_53 : f32 to vector<8x8xf32>
    %103 = arith.mulf %101, %102 : vector<8x8xf32>
    %cst_54 = arith.constant -3.40282347E+38 : f32
    %104 = vector.shape_cast %46 : vector<1x8xi1> to vector<1x8xi1>
    %105 = vector.broadcast %104 : vector<1x8xi1> to vector<8x8xi1>
    %106 = vector.broadcast %cst_54 : f32 to vector<8x8xf32>
    %107 = arith.select %105, %106, %103 : vector<8x8xi1>, vector<8x8xf32>
    %cst_55 = arith.constant dense<0xFF800000> : vector<8xf32>
    %108 = vector.multi_reduction <maximumf>, %107, %cst_55 [1] : vector<8x8xf32> to vector<8xf32>
    %109 = vector.shape_cast %108 : vector<8xf32> to vector<8x1xf32>
    %110 = vector.broadcast %109 : vector<8x1xf32> to vector<8x8xf32>
    %111 = arith.subf %107, %110 : vector<8x8xf32>
    %112 = math.exp %111 : vector<8x8xf32>
    %cst_56 = arith.constant dense<0.000000e+00> : vector<8xf32>
    %113 = vector.multi_reduction <add>, %112, %cst_56 [1] : vector<8x8xf32> to vector<8xf32>
    %114 = vector.shape_cast %113 : vector<8xf32> to vector<8x1xf32>
    %115 = tpu.reciprocal %114 {approx = true} : vector<8x1xf32> -> vector<8x1xf32>
    %116 = vector.broadcast %115 : vector<8x1xf32> to vector<8x8xf32>
    %117 = arith.mulf %112, %116 : vector<8x8xf32>
    %cst_57 = arith.constant 0.000000e+00 : f32
    %118 = vector.shape_cast %46 : vector<1x8xi1> to vector<1x8xi1>
    %119 = vector.broadcast %118 : vector<1x8xi1> to vector<8x8xi1>
    %120 = vector.broadcast %cst_57 : f32 to vector<8x8xf32>
    %121 = arith.select %119, %120, %117 : vector<8x8xi1>, vector<8x8xf32>
    %cst_58 = arith.constant dense<0.000000e+00> : vector<8x8xf32>
    %122 = tpu.matmul %121, %88, %cst_58 {dimension_numbers = #tpu.dot_dimension_numbers<[1], [0], [0], [1], [0, 0, 1, 1], [], []>} : vector<8x8xf32>, vector<8x8xf32>, vector<8x8xf32> -> vector<8x8xf32>
    %123 = vector.extract_strided_slice %38 {offsets = [0, 16], sizes = [8, 8], strides = [1, 1]} : vector<8x32xf32> to vector<8x8xf32>
    %124 = vector.extract_strided_slice %42 {offsets = [0, 16], sizes = [8, 8], strides = [1, 1]} : vector<8x32xf32> to vector<8x8xf32>
    %125 = vector.extract_strided_slice %19 {offsets = [0, 16], sizes = [8, 8], strides = [1, 1]} : vector<8x32xf32> to vector<8x8xf32>
    %126 = vector.extract_strided_slice %26 {offsets = [0, 16], sizes = [8, 8], strides = [1, 1]} : vector<8x32xf32> to vector<8x8xf32>
    %127 = vector.extract_strided_slice %34 {offsets = [0, 16], sizes = [15, 8], strides = [1, 1]} : vector<15x32xf32> to vector<15x8xf32>
    %cst_59 = arith.constant dense<0.000000e+00> : vector<8x8xf32>
    %128 = tpu.matmul %123, %125, %cst_59 {dimension_numbers = #tpu.dot_dimension_numbers<[1], [1], [0], [0], [0, 0, 1, 0], [], []>} : vector<8x8xf32>, vector<8x8xf32>, vector<8x8xf32> -> vector<8x8xf32>
    %cst_60 = arith.constant dense<0.000000e+00> : vector<8x15xf32>
    %129 = tpu.matmul %124, %127, %cst_60 {dimension_numbers = #tpu.dot_dimension_numbers<[1], [1], [0], [0], [0, 0, 1, 0], [], []>} : vector<8x8xf32>, vector<15x8xf32>, vector<8x15xf32> -> vector<8x15xf32>
    %130 = vector.extract_strided_slice %129 {offsets = [0, 7], sizes = [1, 8], strides = [1, 1]} : vector<8x15xf32> to vector<1x8xf32>
    %131 = vector.extract_strided_slice %129 {offsets = [1, 6], sizes = [1, 8], strides = [1, 1]} : vector<8x15xf32> to vector<1x8xf32>
    %132 = vector.extract_strided_slice %129 {offsets = [2, 5], sizes = [1, 8], strides = [1, 1]} : vector<8x15xf32> to vector<1x8xf32>
    %133 = vector.extract_strided_slice %129 {offsets = [3, 4], sizes = [1, 8], strides = [1, 1]} : vector<8x15xf32> to vector<1x8xf32>
    %134 = vector.extract_strided_slice %129 {offsets = [4, 3], sizes = [1, 8], strides = [1, 1]} : vector<8x15xf32> to vector<1x8xf32>
    %135 = vector.extract_strided_slice %129 {offsets = [5, 2], sizes = [1, 8], strides = [1, 1]} : vector<8x15xf32> to vector<1x8xf32>
    %136 = vector.extract_strided_slice %129 {offsets = [6, 1], sizes = [1, 8], strides = [1, 1]} : vector<8x15xf32> to vector<1x8xf32>
    %137 = vector.extract_strided_slice %129 {offsets = [7, 0], sizes = [1, 8], strides = [1, 1]} : vector<8x15xf32> to vector<1x8xf32>
    %138 = tpu.concatenate %130, %131, %132, %133, %134, %135, %136, %137 in 0 : vector<1x8xf32>, vector<1x8xf32>, vector<1x8xf32>, vector<1x8xf32>, vector<1x8xf32>, vector<1x8xf32>, vector<1x8xf32>, vector<1x8xf32> -> vector<8x8xf32>
    %139 = arith.addf %128, %138 : vector<8x8xf32>
    %cst_61 = arith.constant 0.353553385 : f32
    %140 = vector.broadcast %cst_61 : f32 to vector<8x8xf32>
    %141 = arith.mulf %139, %140 : vector<8x8xf32>
    %cst_62 = arith.constant -3.40282347E+38 : f32
    %142 = vector.shape_cast %46 : vector<1x8xi1> to vector<1x8xi1>
    %143 = vector.broadcast %142 : vector<1x8xi1> to vector<8x8xi1>
    %144 = vector.broadcast %cst_62 : f32 to vector<8x8xf32>
    %145 = arith.select %143, %144, %141 : vector<8x8xi1>, vector<8x8xf32>
    %cst_63 = arith.constant dense<0xFF800000> : vector<8xf32>
    %146 = vector.multi_reduction <maximumf>, %145, %cst_63 [1] : vector<8x8xf32> to vector<8xf32>
    %147 = vector.shape_cast %146 : vector<8xf32> to vector<8x1xf32>
    %148 = vector.broadcast %147 : vector<8x1xf32> to vector<8x8xf32>
    %149 = arith.subf %145, %148 : vector<8x8xf32>
    %150 = math.exp %149 : vector<8x8xf32>
    %cst_64 = arith.constant dense<0.000000e+00> : vector<8xf32>
    %151 = vector.multi_reduction <add>, %150, %cst_64 [1] : vector<8x8xf32> to vector<8xf32>
    %152 = vector.shape_cast %151 : vector<8xf32> to vector<8x1xf32>
    %153 = tpu.reciprocal %152 {approx = true} : vector<8x1xf32> -> vector<8x1xf32>
    %154 = vector.broadcast %153 : vector<8x1xf32> to vector<8x8xf32>
    %155 = arith.mulf %150, %154 : vector<8x8xf32>
    %cst_65 = arith.constant 0.000000e+00 : f32
    %156 = vector.shape_cast %46 : vector<1x8xi1> to vector<1x8xi1>
    %157 = vector.broadcast %156 : vector<1x8xi1> to vector<8x8xi1>
    %158 = vector.broadcast %cst_65 : f32 to vector<8x8xf32>
    %159 = arith.select %157, %158, %155 : vector<8x8xi1>, vector<8x8xf32>
    %cst_66 = arith.constant dense<0.000000e+00> : vector<8x8xf32>
    %160 = tpu.matmul %159, %126, %cst_66 {dimension_numbers = #tpu.dot_dimension_numbers<[1], [0], [0], [1], [0, 0, 1, 1], [], []>} : vector<8x8xf32>, vector<8x8xf32>, vector<8x8xf32> -> vector<8x8xf32>
    %161 = vector.extract_strided_slice %38 {offsets = [0, 24], sizes = [8, 8], strides = [1, 1]} : vector<8x32xf32> to vector<8x8xf32>
    %162 = vector.extract_strided_slice %42 {offsets = [0, 24], sizes = [8, 8], strides = [1, 1]} : vector<8x32xf32> to vector<8x8xf32>
    %163 = vector.extract_strided_slice %19 {offsets = [0, 24], sizes = [8, 8], strides = [1, 1]} : vector<8x32xf32> to vector<8x8xf32>
    %164 = vector.extract_strided_slice %26 {offsets = [0, 24], sizes = [8, 8], strides = [1, 1]} : vector<8x32xf32> to vector<8x8xf32>
    %165 = vector.extract_strided_slice %34 {offsets = [0, 24], sizes = [15, 8], strides = [1, 1]} : vector<15x32xf32> to vector<15x8xf32>
    %cst_67 = arith.constant dense<0.000000e+00> : vector<8x8xf32>
    %166 = tpu.matmul %161, %163, %cst_67 {dimension_numbers = #tpu.dot_dimension_numbers<[1], [1], [0], [0], [0, 0, 1, 0], [], []>} : vector<8x8xf32>, vector<8x8xf32>, vector<8x8xf32> -> vector<8x8xf32>
    %cst_68 = arith.constant dense<0.000000e+00> : vector<8x15xf32>
    %167 = tpu.matmul %162, %165, %cst_68 {dimension_numbers = #tpu.dot_dimension_numbers<[1], [1], [0], [0], [0, 0, 1, 0], [], []>} : vector<8x8xf32>, vector<15x8xf32>, vector<8x15xf32> -> vector<8x15xf32>
    %168 = vector.extract_strided_slice %167 {offsets = [0, 7], sizes = [1, 8], strides = [1, 1]} : vector<8x15xf32> to vector<1x8xf32>
    %169 = vector.extract_strided_slice %167 {offsets = [1, 6], sizes = [1, 8], strides = [1, 1]} : vector<8x15xf32> to vector<1x8xf32>
    %170 = vector.extract_strided_slice %167 {offsets = [2, 5], sizes = [1, 8], strides = [1, 1]} : vector<8x15xf32> to vector<1x8xf32>
    %171 = vector.extract_strided_slice %167 {offsets = [3, 4], sizes = [1, 8], strides = [1, 1]} : vector<8x15xf32> to vector<1x8xf32>
    %172 = vector.extract_strided_slice %167 {offsets = [4, 3], sizes = [1, 8], strides = [1, 1]} : vector<8x15xf32> to vector<1x8xf32>
    %173 = vector.extract_strided_slice %167 {offsets = [5, 2], sizes = [1, 8], strides = [1, 1]} : vector<8x15xf32> to vector<1x8xf32>
    %174 = vector.extract_strided_slice %167 {offsets = [6, 1], sizes = [1, 8], strides = [1, 1]} : vector<8x15xf32> to vector<1x8xf32>
    %175 = vector.extract_strided_slice %167 {offsets = [7, 0], sizes = [1, 8], strides = [1, 1]} : vector<8x15xf32> to vector<1x8xf32>
    %176 = tpu.concatenate %168, %169, %170, %171, %172, %173, %174, %175 in 0 : vector<1x8xf32>, vector<1x8xf32>, vector<1x8xf32>, vector<1x8xf32>, vector<1x8xf32>, vector<1x8xf32>, vector<1x8xf32>, vector<1x8xf32> -> vector<8x8xf32>
    %177 = arith.addf %166, %176 : vector<8x8xf32>
    %cst_69 = arith.constant 0.353553385 : f32
    %178 = vector.broadcast %cst_69 : f32 to vector<8x8xf32>
    %179 = arith.mulf %177, %178 : vector<8x8xf32>
    %cst_70 = arith.constant -3.40282347E+38 : f32
    %180 = vector.shape_cast %46 : vector<1x8xi1> to vector<1x8xi1>
    %181 = vector.broadcast %180 : vector<1x8xi1> to vector<8x8xi1>
    %182 = vector.broadcast %cst_70 : f32 to vector<8x8xf32>
    %183 = arith.select %181, %182, %179 : vector<8x8xi1>, vector<8x8xf32>
    %cst_71 = arith.constant dense<0xFF800000> : vector<8xf32>
    %184 = vector.multi_reduction <maximumf>, %183, %cst_71 [1] : vector<8x8xf32> to vector<8xf32>
    %185 = vector.shape_cast %184 : vector<8xf32> to vector<8x1xf32>
    %186 = vector.broadcast %185 : vector<8x1xf32> to vector<8x8xf32>
    %187 = arith.subf %183, %186 : vector<8x8xf32>
    %188 = math.exp %187 : vector<8x8xf32>
    %cst_72 = arith.constant dense<0.000000e+00> : vector<8xf32>
    %189 = vector.multi_reduction <add>, %188, %cst_72 [1] : vector<8x8xf32> to vector<8xf32>
    %190 = vector.shape_cast %189 : vector<8xf32> to vector<8x1xf32>
    %191 = tpu.reciprocal %190 {approx = true} : vector<8x1xf32> -> vector<8x1xf32>
    %192 = vector.broadcast %191 : vector<8x1xf32> to vector<8x8xf32>
    %193 = arith.mulf %188, %192 : vector<8x8xf32>
    %cst_73 = arith.constant 0.000000e+00 : f32
    %194 = vector.shape_cast %46 : vector<1x8xi1> to vector<1x8xi1>
    %195 = vector.broadcast %194 : vector<1x8xi1> to vector<8x8xi1>
    %196 = vector.broadcast %cst_73 : f32 to vector<8x8xf32>
    %197 = arith.select %195, %196, %193 : vector<8x8xi1>, vector<8x8xf32>
    %cst_74 = arith.constant dense<0.000000e+00> : vector<8x8xf32>
    %198 = tpu.matmul %197, %164, %cst_74 {dimension_numbers = #tpu.dot_dimension_numbers<[1], [0], [0], [1], [0, 0, 1, 1], [], []>} : vector<8x8xf32>, vector<8x8xf32>, vector<8x8xf32> -> vector<8x8xf32>
    %199 = tpu.concatenate %84, %122, %160, %198 in 1 : vector<8x8xf32>, vector<8x8xf32>, vector<8x8xf32>, vector<8x8xf32> -> vector<8x32xf32>
    %c4 = arith.constant 4 : index
    %c0_75 = arith.constant 0 : index
    %c0_76 = arith.constant 0 : index
    %200 = vector.load %arg6[%c4, %c0_75, %c0_76] : memref<5x32x32xf32, #tpu.memory_space<vmem>>, vector<1x32x32xf32>
    %201 = vector.shape_cast %200 : vector<1x32x32xf32> to vector<32x32xf32>
    %cst_77 = arith.constant dense<0.000000e+00> : vector<8x32xf32>
    %202 = tpu.matmul %199, %201, %cst_77 {dimension_numbers = #tpu.dot_dimension_numbers<[1], [0], [0], [1], [0, 0, 1, 1], [], []>} : vector<8x32xf32>, vector<32x32xf32>, vector<8x32xf32> -> vector<8x32xf32>
    %c4_78 = arith.constant 4 : index
    %c0_79 = arith.constant 0 : index
    %c0_80 = arith.constant 0 : index
    %203 = vector.load %arg7[%c4_78, %c0_79, %c0_80] : memref<5x1x32xf32, #tpu.memory_space<vmem>>, vector<1x1x32xf32>
    %204 = vector.shape_cast %203 : vector<1x1x32xf32> to vector<1x32xf32>
    %205 = vector.broadcast %204 : vector<1x32xf32> to vector<8x32xf32>
    %206 = arith.addf %202, %205 : vector<8x32xf32>
    %c0_81 = arith.constant 0 : index
    %c0_82 = arith.constant 0 : index
    %c0_83 = arith.constant 0 : index
    %207 = vector.load %arg9[%c0_81, %c0_82, %c0_83] : memref<1x8x32xf32, #tpu.memory_space<vmem>>, vector<1x8x32xf32>
    %208 = vector.shape_cast %207 : vector<1x8x32xf32> to vector<8x32xf32>
    %209 = vector.shape_cast %206 : vector<8x32xf32> to vector<1x8x32xf32>
    tpu.vector_store %arg9[%c0_81, %c0_82, %c0_83], %209 {strides = array<i32>} : memref<1x8x32xf32, #tpu.memory_space<vmem>>, vector<1x8x32xf32>,
    return
  }
  func.func @transform_0(%arg0: i32) -> (i32, i32, i32) {
    %c0_i32 = arith.constant 0 : i32
    %c0_i32_0 = arith.constant 0 : i32
    %c0_i32_1 = arith.constant 0 : i32
    return %arg0, %c0_i32, %c0_i32_0 : i32, i32, i32
  }
  func.func @transform_1(%arg0: i32) -> (i32, i32, i32) {
    %c0_i32 = arith.constant 0 : i32
    %c0_i32_0 = arith.constant 0 : i32
    %c0_i32_1 = arith.constant 0 : i32
    return %arg0, %c0_i32, %c0_i32_0 : i32, i32, i32
  }
  func.func @transform_2(%arg0: i32) -> (i32, i32, i32) {
    %c0_i32 = arith.constant 0 : i32
    %c0_i32_0 = arith.constant 0 : i32
    %c0_i32_1 = arith.constant 0 : i32
    return %arg0, %c0_i32, %c0_i32_0 : i32, i32, i32
  }
  func.func @transform_3(%arg0: i32) -> (i32, i32, i32) {
    %c0_i32 = arith.constant 0 : i32
    %c0_i32_0 = arith.constant 0 : i32
    %c0_i32_1 = arith.constant 0 : i32
    return %arg0, %c0_i32, %c0_i32_0 : i32, i32, i32
  }
  func.func @transform_4(%arg0: i32) -> (i32, i32) {
    %c0_i32 = arith.constant 0 : i32
    %c0_i32_0 = arith.constant 0 : i32
    %c0_i32_1 = arith.constant 0 : i32
    return %c0_i32, %c0_i32_0 : i32, i32
  }
  func.func @transform_5(%arg0: i32) -> (i32, i32, i32) {
    %c0_i32 = arith.constant 0 : i32
    %c0_i32_0 = arith.constant 0 : i32
    %c0_i32_1 = arith.constant 0 : i32
    %c0_i32_2 = arith.constant 0 : i32
    return %c0_i32, %c0_i32_0, %c0_i32_1 : i32, i32, i32
  }
  func.func @transform_6(%arg0: i32) -> (i32, i32, i32) {
    %c0_i32 = arith.constant 0 : i32
    %c0_i32_0 = arith.constant 0 : i32
    %c0_i32_1 = arith.constant 0 : i32
    %c0_i32_2 = arith.constant 0 : i32
    return %c0_i32, %c0_i32_0, %c0_i32_1 : i32, i32, i32
  }
  func.func @transform_7(%arg0: i32) -> (i32, i32, i32) {
    %c0_i32 = arith.constant 0 : i32
    %c0_i32_0 = arith.constant 0 : i32
    %c0_i32_1 = arith.constant 0 : i32
    %c0_i32_2 = arith.constant 0 : i32
    return %c0_i32, %c0_i32_0, %c0_i32_1 : i32, i32, i32
  }
  func.func @transform_8(%arg0: i32) -> (i32, i32, i32) {
    %c0_i32 = arith.constant 0 : i32
    %c0_i32_0 = arith.constant 0 : i32
    %c0_i32_1 = arith.constant 0 : i32
    return %arg0, %c0_i32, %c0_i32_0 : i32, i32, i32
  }
}

</mosaic_0001>

<llo_original>
// kernel: rel_block_mha_forward.1
$region0: #{rel_block_mha_forward.1}
  #allocation0 [shape = 'u32[]', space=smem, size = 0x4, offset = 0x4, fixed_abs, tag = 'smem constant byte address 0x4 - core index']
  #allocation1 [shape = 'u32[144,128]{1,0:T(1,128)}', space=vmem, size = 0x12000, scoped, tag = 'internal scratch']
  %s0 = inlined_call_operand.hbm [shape: f32[2,8,32], index: 0, kind: input, shape index: {}]
  %s1 = inlined_call_operand.hbm [shape: f32[2,8,32], index: 1, kind: input, shape index: {}]
  %s2 = inlined_call_operand.hbm [shape: f32[2,8,32], index: 2, kind: input, shape index: {}]
  %s3 = inlined_call_operand.vmem [shape: s32[2,1,8], index: 3, kind: input, shape index: {}]
  %s4 = inlined_call_operand.vmem [shape: f32[15,32], index: 4, kind: input, shape index: {}]
  %s5 = inlined_call_operand.hbm [shape: f32[5,32,32], index: 5, kind: input, shape index: {}]
  %s6 = inlined_call_operand.hbm [shape: f32[5,1,32], index: 6, kind: input, shape index: {}]
  %s7 = inlined_call_operand.vmem [shape: f32[2,1,32], index: 7, kind: input, shape index: {}]
  %s8 = inlined_call_operand.hbm [shape: f32[2,8,32], index: 8, kind: output, shape index: {}]
  %s9 = sld [smem:[#allocation0]]
  $region85: #{rel_block_mha_forward.1} parent=0
    _
  %s11 = ssub.s32 1, %s9
  %s12 = scalar_select 0, %s11, %s9
  $region1: #{rel_block_mha_forward.1} parent=0
    #allocation2 [shape = 'u8[8192]{0}', space=vmem, size = 0x2000, scoped, tag = 'input window, operand 0']
    #allocation3 [shape = 's32[2]{0}', space=sflag, size = 0x8, scoped, tag = 'scoped memory for rel_block_mha_forward.1']
    #allocation4 [shape = 's32[2]{0}', space=sflag, size = 0x8, scoped, tag = 'scoped memory for rel_block_mha_forward.1']
    #allocation5 [shape = 'u8[8192]{0}', space=vmem, size = 0x2000, scoped, tag = 'input window, operand 1']
    #allocation6 [shape = 's32[2]{0}', space=sflag, size = 0x8, scoped, tag = 'scoped memory for rel_block_mha_forward.1']
    #allocation7 [shape = 'u8[8192]{0}', space=vmem, size = 0x2000, scoped, tag = 'input window, operand 2']
    #allocation8 [shape = 'u8[81920]{0}', space=vmem, size = 0x14000, scoped, tag = 'input window, operand 5, single buffered']
    #allocation9 [shape = 's32[1]{0}', space=sflag, size = 0x4, scoped, tag = 'scoped memory for rel_block_mha_forward.1']
    #allocation10 [shape = 'u8[2560]{0}', space=vmem, size = 0xc00, scoped, tag = 'input window, operand 6, single buffered']
    #allocation11 [shape = 'u8[8192]{0}', space=vmem, size = 0x2000, scoped, tag = 'output window, operand 0']
    %13 = vsyncpa [#allocation3], 0
    %s14 = scalar_lea.sflag [#allocation3], 1
    %15 = vsyncpa %s14, 0
    %16 = vsyncpa [#allocation6], 0
    %s17 = scalar_lea.sflag [#allocation6], 1
    %18 = vsyncpa %s17, 0
    %19 = vsyncpa [#allocation9], 0
    %20 = vsyncpa [#allocation4], 0
    %s21 = scalar_lea.sflag [#allocation4], 1
    %22 = vsyncpa %s21, 0
    loop: start=0, step=1, limit=4
    $region2: #{rel_block_mha_forward.1} parent=1 // loop_pre_header
      _
    $region3: #{rel_block_mha_forward.1} parent=1 // loop_header
      %s24 = sphi 0, %s28
      %p25 = scmp.ge.s32.totalorder %s24, 4
      %s34 = sphi 0, %s36
      %s37 = sphi 0, %s34
      %s38 = sphi 0, %s37
      %s54 = sphi 0, %s38
      %s60 = sphi 0, %s62
      %s63 = sphi 0, %s60
      %s64 = sphi 0, %s63
      %s80 = sphi 0, %s64
      %s86 = sphi 0, %s88
      %s89 = sphi 0, %s86
      %s90 = sphi 0, %s89
      %s106 = sphi 0, %s90
      %s112 = sphi 0, %s114
      %s115 = sphi 0, %s112
      %s116 = sphi 0, %s115
      %s132 = sphi 0, %s116
      %s136 = sphi 0, %s136
      %s138 = sphi 0, %s136
      %s139 = sphi 0, %s138
      %s153 = sphi 0, %s139
      %s157 = sphi 0, %s157
      %s159 = sphi 0, %s157
      %s160 = sphi 0, %s159
      %s174 = sphi 0, %s160
      %s178 = sphi 0, %s178
      %s180 = sphi 0, %s178
      %s181 = sphi 0, %s180
      %s195 = sphi 0, %s181
      %s199 = sphi 0, %s199
      %s201 = sphi 0, %s199
      %s202 = sphi 0, %s201
      %s216 = sphi 0, %s202
      %s222 = sphi 0, %s224
      %s225 = sphi 0, %s222
      %s226 = sphi 0, %s225
      %s242 = sphi 0, %s226
    $region4: #{rel_block_mha_forward.1} parent=1 // loop_header_branch
      %27 = sbr.rel (%p25) target = $region8
    $region5: #{rel_block_mha_forward.1} parent=1 // loop_body
      %s29 = ssub.s32 %s24, 1
      %s30 = ssub.s32 %s24, 2
      %s31 = sadd.s32 %s24, 1
      %s32 = ssub.s32 %s24, %s31
      %p33 = scmp.eq.s32.totalorder %s32, 0
      %s35 = sadd.s32 %s34, 1
      %s36 = scalar_select %p33, %s34, %s35
      %p39 = pneg %p33
      %p40 = scmp.eq.s32.totalorder %s24, 1
      %p41 = por %p39, %p40
      %p42 = scmp.ne.s32.totalorder %s34, %s37
      %p43 = scmp.eq.s32.totalorder %s24, 0
      %p44 = por %p42, %p43
      %p45 = scmp.ne.s32.totalorder %s34, %s37
      %p46 = scmp.eq.s32.totalorder %s29, 1
      %p47 = por %p45, %p46
      %p48 = scmp.ne.s32.totalorder %s37, %s38
      %p49 = scmp.eq.s32.totalorder %s29, 0
      %p50 = por %p48, %p49
      %p51 = scmp.ne.s32.totalorder %s37, %s38
      %p52 = scmp.eq.s32.totalorder %s30, 1
      %p53 = por %p51, %p52
      %p55 = scmp.ne.s32.totalorder %s38, %s54
      %p56 = scmp.eq.s32.totalorder %s30, 0
      %p57 = por %p55, %p56
      %s58 = ssub.s32 %s24, %s31
      %p59 = scmp.eq.s32.totalorder %s58, 0
      %s61 = sadd.s32 %s60, 1
      %s62 = scalar_select %p59, %s60, %s61
      %p65 = pneg %p59
      %p66 = scmp.eq.s32.totalorder %s24, 1
      %p67 = por %p65, %p66
      %p68 = scmp.ne.s32.totalorder %s60, %s63
      %p69 = scmp.eq.s32.totalorder %s24, 0
      %p70 = por %p68, %p69
      %p71 = scmp.ne.s32.totalorder %s60, %s63
      %p72 = scmp.eq.s32.totalorder %s29, 1
      %p73 = por %p71, %p72
      %p74 = scmp.ne.s32.totalorder %s63, %s64
      %p75 = scmp.eq.s32.totalorder %s29, 0
      %p76 = por %p74, %p75
      %p77 = scmp.ne.s32.totalorder %s63, %s64
      %p78 = scmp.eq.s32.totalorder %s30, 1
      %p79 = por %p77, %p78
      %p81 = scmp.ne.s32.totalorder %s64, %s80
      %p82 = scmp.eq.s32.totalorder %s30, 0
      %p83 = por %p81, %p82
      %s84 = ssub.s32 %s24, %s31
      %p85 = scmp.eq.s32.totalorder %s84, 0
      %s87 = sadd.s32 %s86, 1
      %s88 = scalar_select %p85, %s86, %s87
      %p91 = pneg %p85
      %p92 = scmp.eq.s32.totalorder %s24, 1
      %p93 = por %p91, %p92
      %p94 = scmp.ne.s32.totalorder %s86, %s89
      %p95 = scmp.eq.s32.totalorder %s24, 0
      %p96 = por %p94, %p95
      %p97 = scmp.ne.s32.totalorder %s86, %s89
      %p98 = scmp.eq.s32.totalorder %s29, 1
      %p99 = por %p97, %p98
      %p100 = scmp.ne.s32.totalorder %s89, %s90
      %p101 = scmp.eq.s32.totalorder %s29, 0
      %p102 = por %p100, %p101
      %p103 = scmp.ne.s32.totalorder %s89, %s90
      %p104 = scmp.eq.s32.totalorder %s30, 1
      %p105 = por %p103, %p104
      %p107 = scmp.ne.s32.totalorder %s90, %s106
      %p108 = scmp.eq.s32.totalorder %s30, 0
      %p109 = por %p107, %p108
      %s110 = ssub.s32 %s24, %s31
      %p111 = scmp.eq.s32.totalorder %s110, 0
      %s113 = sadd.s32 %s112, 1
      %s114 = scalar_select %p111, %s112, %s113
      %p117 = pneg %p111
      %p118 = scmp.eq.s32.totalorder %s24, 1
      %p119 = por %p117, %p118
      %p120 = scmp.ne.s32.totalorder %s112, %s115
      %p121 = scmp.eq.s32.totalorder %s24, 0
      %p122 = por %p120, %p121
      %p123 = scmp.ne.s32.totalorder %s112, %s115
      %p124 = scmp.eq.s32.totalorder %s29, 1
      %p125 = por %p123, %p124
      %p126 = scmp.ne.s32.totalorder %s115, %s116
      %p127 = scmp.eq.s32.totalorder %s29, 0
      %p128 = por %p126, %p127
      %p129 = scmp.ne.s32.totalorder %s115, %s116
      %p130 = scmp.eq.s32.totalorder %s30, 1
      %p131 = por %p129, %p130
      %p133 = scmp.ne.s32.totalorder %s116, %s132
      %p134 = scmp.eq.s32.totalorder %s30, 0
      %p135 = por %p133, %p134
      %s137 = sadd.s32 %s136, 1
      %p140 = scmp.eq.s32.totalorder %s24, 1
      %p141 = scmp.ne.s32.totalorder %s136, %s138
      %p142 = scmp.eq.s32.totalorder %s24, 0
      %p143 = por %p141, %p142
      %p144 = scmp.ne.s32.totalorder %s136, %s138
      %p145 = scmp.eq.s32.totalorder %s29, 1
      %p146 = por %p144, %p145
      %p147 = scmp.ne.s32.totalorder %s138, %s139
      %p148 = scmp.eq.s32.totalorder %s29, 0
      %p149 = por %p147, %p148
      %p150 = scmp.ne.s32.totalorder %s138, %s139
      %p151 = scmp.eq.s32.totalorder %s30, 1
      %p152 = por %p150, %p151
      %p154 = scmp.ne.s32.totalorder %s139, %s153
      %p155 = scmp.eq.s32.totalorder %s30, 0
      %p156 = por %p154, %p155
      %s158 = sadd.s32 %s157, 1
      %p161 = scmp.eq.s32.totalorder %s24, 1
      %p162 = scmp.ne.s32.totalorder %s157, %s159
      %p163 = scmp.eq.s32.totalorder %s24, 0
      %p164 = por %p162, %p163
      %p165 = scmp.ne.s32.totalorder %s157, %s159
      %p166 = scmp.eq.s32.totalorder %s29, 1
      %p167 = por %p165, %p166
      %p168 = scmp.ne.s32.totalorder %s159, %s160
      %p169 = scmp.eq.s32.totalorder %s29, 0
      %p170 = por %p168, %p169
      %p171 = scmp.ne.s32.totalorder %s159, %s160
      %p172 = scmp.eq.s32.totalorder %s30, 1
      %p173 = por %p171, %p172
      %p175 = scmp.ne.s32.totalorder %s160, %s174
      %p176 = scmp.eq.s32.totalorder %s30, 0
      %p177 = por %p175, %p176
      %s179 = sadd.s32 %s178, 1
      %p182 = scmp.eq.s32.totalorder %s24, 1
      %p183 = scmp.ne.s32.totalorder %s178, %s180
      %p184 = scmp.eq.s32.totalorder %s24, 0
      %p185 = por %p183, %p184
      %p186 = scmp.ne.s32.totalorder %s178, %s180
      %p187 = scmp.eq.s32.totalorder %s29, 1
      %p188 = por %p186, %p187
      %p189 = scmp.ne.s32.totalorder %s180, %s181
      %p190 = scmp.eq.s32.totalorder %s29, 0
      %p191 = por %p189, %p190
      %p192 = scmp.ne.s32.totalorder %s180, %s181
      %p193 = scmp.eq.s32.totalorder %s30, 1
      %p194 = por %p192, %p193
      %p196 = scmp.ne.s32.totalorder %s181, %s195
      %p197 = scmp.eq.s32.totalorder %s30, 0
      %p198 = por %p196, %p197
      %s200 = sadd.s32 %s199, 1
      %p203 = scmp.eq.s32.totalorder %s24, 1
      %p204 = scmp.ne.s32.totalorder %s199, %s201
      %p205 = scmp.eq.s32.totalorder %s24, 0
      %p206 = por %p204, %p205
      %p207 = scmp.ne.s32.totalorder %s199, %s201
      %p208 = scmp.eq.s32.totalorder %s29, 1
      %p209 = por %p207, %p208
      %p210 = scmp.ne.s32.totalorder %s201, %s202
      %p211 = scmp.eq.s32.totalorder %s29, 0
      %p212 = por %p210, %p211
      %p213 = scmp.ne.s32.totalorder %s201, %s202
      %p214 = scmp.eq.s32.totalorder %s30, 1
      %p215 = por %p213, %p214
      %p217 = scmp.ne.s32.totalorder %s202, %s216
      %p218 = scmp.eq.s32.totalorder %s30, 0
      %p219 = por %p217, %p218
      %s220 = ssub.s32 %s24, %s31
      %p221 = scmp.eq.s32.totalorder %s220, 0
      %s223 = sadd.s32 %s222, 1
      %s224 = scalar_select %p221, %s222, %s223
      %p227 = pneg %p221
      %p228 = scmp.eq.s32.totalorder %s24, 1
      %p229 = por %p227, %p228
      %p230 = scmp.ne.s32.totalorder %s222, %s225
      %p231 = scmp.eq.s32.totalorder %s24, 0
      %p232 = por %p230, %p231
      %p233 = scmp.ne.s32.totalorder %s222, %s225
      %p234 = scmp.eq.s32.totalorder %s29, 1
      %p235 = por %p233, %p234
      %p236 = scmp.ne.s32.totalorder %s225, %s226
      %p237 = scmp.eq.s32.totalorder %s29, 0
      %p238 = por %p236, %p237
      %p239 = scmp.ne.s32.totalorder %s225, %s226
      %p240 = scmp.eq.s32.totalorder %s30, 1
      %p241 = por %p239, %p240
      %p243 = scmp.ne.s32.totalorder %s226, %s242
      %p244 = scmp.eq.s32.totalorder %s30, 0
      %p245 = por %p243, %p244
      %p246 = scmp.le.s32.totalorder 1, %s24
      %p247 = scmp.lt.s32.totalorder %s24, 3
      %p248 = pnand %p246, %p247
      %p249 = pneg %p248
      // Predicated region
      $region9: #{rel_block_mha_forward.1} parent=5 // pred_check
        _
      $region10: #{rel_block_mha_forward.1} parent=5 // pred_check_branch
        %251 = sbr.rel (%p248) target = $region12
      $region11: #{rel_block_mha_forward.1} parent=5 // pred_region
        %s252 = ssub.s32 %s24, 1
        // Predicated region
        $region13: #{rel_block_mha_forward.1} parent=11 // pred_check
          %p253 = pneg %p149
        $region14: #{rel_block_mha_forward.1} parent=11 // pred_check_branch
          %255 = sbr.rel (%p253) target = $region16
        $region15: #{rel_block_mha_forward.1} parent=11 // pred_region
          _
        $region16: #{rel_block_mha_forward.1} parent=11 // pred_fallthru
          _
        // Predicated region
        $region17: #{rel_block_mha_forward.1} parent=11 // pred_check
          %p256 = pneg %p170
        $region18: #{rel_block_mha_forward.1} parent=11 // pred_check_branch
          %258 = sbr.rel (%p256) target = $region20
        $region19: #{rel_block_mha_forward.1} parent=11 // pred_region
          %s260 = ssub.s32 2560, 2560
          %261 = vsyncadd [#allocation9], %s260
          %s262 = sshll.u32 [#allocation8], 4
          %s263 = int_to_ptr.vmem [resolvable:$true] %s262
          %268 = dma.hbm_to_vmem [thread:$0]  %s5, 2560, %s263, [#allocation9], 128, 128, 8
        $region20: #{rel_block_mha_forward.1} parent=11 // pred_fallthru
          _
        // Predicated region
        $region21: #{rel_block_mha_forward.1} parent=11 // pred_check
          %p269 = pneg %p191
        $region22: #{rel_block_mha_forward.1} parent=11 // pred_check_branch
          %271 = sbr.rel (%p269) target = $region24
        $region23: #{rel_block_mha_forward.1} parent=11 // pred_region
          %s273 = ssub.s32 80, 80
          %274 = vsyncadd [#allocation9], %s273
          %s275 = sshll.u32 [#allocation10], 4
          %s276 = int_to_ptr.vmem [resolvable:$true] %s275
          %281 = dma.hbm_to_vmem [thread:$0]  %s6, 80, %s276, [#allocation9], 16, 16, 1
        $region24: #{rel_block_mha_forward.1} parent=11 // pred_fallthru
          _
        // Predicated region
        $region25: #{rel_block_mha_forward.1} parent=11 // pred_check
          %p282 = pneg %p212
        $region26: #{rel_block_mha_forward.1} parent=11 // pred_check_branch
          %284 = sbr.rel (%p282) target = $region28
        $region27: #{rel_block_mha_forward.1} parent=11 // pred_region
          _
        $region28: #{rel_block_mha_forward.1} parent=11 // pred_fallthru
          _
      $region12: #{rel_block_mha_forward.1} parent=5 // pred_fallthru
        _
      %p285 = scmp.lt.s32.totalorder %s24, 2
      // Predicated region
      $region29: #{rel_block_mha_forward.1} parent=5 // pred_check
        %p286 = pneg %p285
      $region30: #{rel_block_mha_forward.1} parent=5 // pred_check_branch
        %288 = sbr.rel (%p286) target = $region32
      $region31: #{rel_block_mha_forward.1} parent=5 // pred_region
        // Predicated region
        $region33: #{rel_block_mha_forward.1} parent=31 // pred_check
          %p289 = pneg %p44
        $region34: #{rel_block_mha_forward.1} parent=31 // pred_check_branch
          %291 = sbr.rel (%p289) target = $region36
        $region35: #{rel_block_mha_forward.1} parent=31 // pred_region
          %s292 = sand.u32 %s34, 1
          %s293 = scalar_lea.sflag [#allocation3], %s292
          %s294 = sand.u32 %s34, 1
          %s295 = smul.addr %s294, 8
          %s296 = scalar_lea.vmem [#allocation2], %s295
          %s298 = ssub.s32 128, 128
          %299 = vsyncadd %s293, %s298
          %s300 = smul.addr %s24, 128
          %s301 = scalar_lea.hbm %s0, %s300
          %s303 = sshll.u32 %s296, 4
          %s304 = int_to_ptr.vmem [resolvable:$true] %s303
          %306 = dma.hbm_to_vmem [thread:$0]  %s301, 128, %s304, %s293
        $region36: #{rel_block_mha_forward.1} parent=31 // pred_fallthru
          _
        // Predicated region
        $region37: #{rel_block_mha_forward.1} parent=31 // pred_check
          %p307 = pneg %p70
        $region38: #{rel_block_mha_forward.1} parent=31 // pred_check_branch
          %309 = sbr.rel (%p307) target = $region40
        $region39: #{rel_block_mha_forward.1} parent=31 // pred_region
          %s310 = sand.u32 %s24, 1
          %s311 = scalar_lea.sflag [#allocation6], %s310
          %s312 = sand.u32 %s60, 1
          %s313 = smul.addr %s312, 8
          %s314 = scalar_lea.vmem [#allocation5], %s313
          %s316 = ssub.s32 128, 128
          %317 = vsyncadd %s311, %s316
          %s318 = smul.addr %s24, 128
          %s319 = scalar_lea.hbm %s1, %s318
          %s321 = sshll.u32 %s314, 4
          %s322 = int_to_ptr.vmem [resolvable:$true] %s321
          %324 = dma.hbm_to_vmem [thread:$0]  %s319, 128, %s322, %s311
        $region40: #{rel_block_mha_forward.1} parent=31 // pred_fallthru
          _
        // Predicated region
        $region41: #{rel_block_mha_forward.1} parent=31 // pred_check
          %p325 = pneg %p96
        $region42: #{rel_block_mha_forward.1} parent=31 // pred_check_branch
          %327 = sbr.rel (%p325) target = $region44
        $region43: #{rel_block_mha_forward.1} parent=31 // pred_region
          %s328 = sand.u32 %s24, 1
          %s329 = scalar_lea.sflag [#allocation6], %s328
          %s330 = sand.u32 %s86, 1
          %s331 = smul.addr %s330, 8
          %s332 = scalar_lea.vmem [#allocation7], %s331
          %s334 = ssub.s32 128, 128
          %335 = vsyncadd %s329, %s334
          %s336 = smul.addr %s24, 128
          %s337 = scalar_lea.hbm %s2, %s336
          %s339 = sshll.u32 %s332, 4
          %s340 = int_to_ptr.vmem [resolvable:$true] %s339
          %342 = dma.hbm_to_vmem [thread:$0]  %s337, 128, %s340, %s329
        $region44: #{rel_block_mha_forward.1} parent=31 // pred_fallthru
          _
        // Predicated region
        $region45: #{rel_block_mha_forward.1} parent=31 // pred_check
          %p343 = pneg %p122
        $region46: #{rel_block_mha_forward.1} parent=31 // pred_check_branch
          %345 = sbr.rel (%p343) target = $region48
        $region47: #{rel_block_mha_forward.1} parent=31 // pred_region
          %p346 = scmp.lt.s32.totalorder %s24, 1
          %s347 = scalar_select %p346, %s24, 1
          %s348 = scalar_lea.vmem %s3, %s347
        $region48: #{rel_block_mha_forward.1} parent=31 // pred_fallthru
          _
      $region32: #{rel_block_mha_forward.1} parent=5 // pred_fallthru
        _
      %p349 = scmp.le.s32.totalorder 1, %s24
      %p350 = scmp.lt.s32.totalorder %s24, 3
      %p351 = pnand %p349, %p350
      %p352 = pneg %p351
      // Predicated region
      $region49: #{rel_block_mha_forward.1} parent=5 // pred_check
        _
      $region50: #{rel_block_mha_forward.1} parent=5 // pred_check_branch
        %354 = sbr.rel (%p351) target = $region52
      $region51: #{rel_block_mha_forward.1} parent=5 // pred_region
        %s355 = ssub.s32 %s24, 1
        %s356 = sand.u32 %s37, 1
        %s357 = scalar_lea.sflag [#allocation3], %s356
        %s358 = sand.u32 %s37, 1
        %s359 = smul.addr %s358, 8
        %s360 = scalar_lea.vmem [#allocation2], %s359
        // Predicated region
        $region53: #{rel_block_mha_forward.1} parent=51 // pred_check
          %p361 = pneg %p50
        $region54: #{rel_block_mha_forward.1} parent=51 // pred_check_branch
          %363 = sbr.rel (%p361) target = $region56
        $region55: #{rel_block_mha_forward.1} parent=51 // pred_region
          %364 = dma.done %s357, 128
        $region56: #{rel_block_mha_forward.1} parent=51 // pred_fallthru
          _
        %s365 = sand.u32 %s29, 1
        %s366 = scalar_lea.sflag [#allocation6], %s365
        %s367 = sand.u32 %s63, 1
        %s368 = smul.addr %s367, 8
        %s369 = scalar_lea.vmem [#allocation5], %s368
        // Predicated region
        $region57: #{rel_block_mha_forward.1} parent=51 // pred_check
          %p370 = pneg %p76
        $region58: #{rel_block_mha_forward.1} parent=51 // pred_check_branch
          %372 = sbr.rel (%p370) target = $region60
        $region59: #{rel_block_mha_forward.1} parent=51 // pred_region
          %373 = dma.done %s366, 128
        $region60: #{rel_block_mha_forward.1} parent=51 // pred_fallthru
          _
        %s374 = sand.u32 %s29, 1
        %s375 = scalar_lea.sflag [#allocation6], %s374
        %s376 = sand.u32 %s89, 1
        %s377 = smul.addr %s376, 8
        %s378 = scalar_lea.vmem [#allocation7], %s377
        // Predicated region
        $region61: #{rel_block_mha_forward.1} parent=51 // pred_check
          %p379 = pneg %p102
        $region62: #{rel_block_mha_forward.1} parent=51 // pred_check_branch
          %381 = sbr.rel (%p379) target = $region64
        $region63: #{rel_block_mha_forward.1} parent=51 // pred_region
          %382 = dma.done %s375, 128
        $region64: #{rel_block_mha_forward.1} parent=51 // pred_fallthru
          _
        // Predicated region
        $region65: #{rel_block_mha_forward.1} parent=51 // pred_check
          %p383 = pneg %p170
        $region66: #{rel_block_mha_forward.1} parent=51 // pred_check_branch
          %385 = sbr.rel (%p383) target = $region68
        $region67: #{rel_block_mha_forward.1} parent=51 // pred_region
          %386 = dma.done [#allocation9], 2560
        $region68: #{rel_block_mha_forward.1} parent=51 // pred_fallthru
          _
        // Predicated region
        $region69: #{rel_block_mha_forward.1} parent=51 // pred_check
          %p387 = pneg %p191
        $region70: #{rel_block_mha_forward.1} parent=51 // pred_check_branch
          %389 = sbr.rel (%p387) target = $region72
        $region71: #{rel_block_mha_forward.1} parent=51 // pred_region
          %390 = dma.done [#allocation9], 80
        $region72: #{rel_block_mha_forward.1} parent=51 // pred_fallthru
          _
        %s391 = sand.u32 %s37, 1
        %s392 = scalar_lea.sflag [#allocation3], %s391
        %s393 = sand.u32 %s37, 1
        %s394 = smul.addr %s393, 8
        %s395 = scalar_lea.vmem [#allocation2], %s394
        %p396 = pneg %p50
        %p397 = pneg %p47
        %s398 = sand.u32 %s29, 1
        %s399 = scalar_lea.sflag [#allocation6], %s398
        %s400 = sand.u32 %s63, 1
        %s401 = smul.addr %s400, 8
        %s402 = scalar_lea.vmem [#allocation5], %s401
        %p403 = pneg %p76
        %p404 = pneg %p73
        %s405 = sand.u32 %s29, 1
        %s406 = scalar_lea.sflag [#allocation6], %s405
        %s407 = sand.u32 %s89, 1
        %s408 = smul.addr %s407, 8
        %s409 = scalar_lea.vmem [#allocation7], %s408
        %p410 = pneg %p102
        %p411 = pneg %p99
        %p412 = scmp.lt.s32.totalorder %s29, 1
        %s413 = scalar_select %p412, %s29, 1
        %s414 = scalar_lea.vmem %s3, %s413
        %p415 = pneg %p128
        %p416 = pneg %p125
        %p417 = pneg %p149
        %p418 = pneg %p146
        %p419 = pneg %p170
        %p420 = pneg %p167
        %p421 = pneg %p191
        %p422 = pneg %p188
        %p423 = pneg %p212
        %p424 = pneg %p209
        %p425 = pneg %p238
        %p426 = pneg %p235
        %s427 = sand.u32 %s225, 1
        %s428 = scalar_lea.sflag [#allocation4], %s427
        %s429 = sand.u32 %s225, 1
        %s430 = smul.addr %s429, 8
        %s431 = scalar_lea.vmem [#allocation11], %s430
        %p432 = scmp.lt.s32.totalorder %s29, 1
        %s433 = scalar_select %p432, %s29, 1
        %s434 = scalar_lea.vmem %s3, %s433
        %v435 = vld [vmem:[%s360] sm:$0xff]
        %v436 = vld [vmem:[%s369] sm:$0xff]
        %v437 = vld [vmem:[%s378] sm:$0xff]
        %v438 = vld [vmem:[#allocation8] sm:$0xff]
        %v439 = vld [vmem:[#allocation8 + $0x8] sm:$0xff]
        %v440 = vld [vmem:[#allocation8 + $0x10] sm:$0xff]
        %v441 = vld [vmem:[#allocation8 + $0x18] sm:$0xff]
        %v442 = vld [vmem:[#allocation10] sm:$0x1]
        %v444 = vlaneseq
        %v445 = vshrl.u32 %v444, 7
        %v446 = vsub.s32 0, %v445
        %v447 = vrot.slane %v442, %v446
        %vm449 = vcmask 261120
        %v451 = vsel %vm449, %v435, 0
        %453 = vmatprep.subr.mxu0 0.0
        %454 = vmatpush1.msra.mxu0 %v438
        %455 = vmatprep.subr.mxu0 0.0
        %456 = vmatpush1.msra.mxu0 %v439
        %457 = vmatprep.subr.mxu0 0.0
        %458 = vmatpush1.msra.mxu0 %v440
        %459 = vmatprep.subr.mxu0 0.0
        %460 = vmatpush1.msra.mxu0 %v441
        %461 = vmatprep.subr.mxu0 0.0
        %462 = vmatpush1.msra.mxu0 0.0
        %463 = vmatprep.subr.mxu0 0.0
        %464 = vmatpush1.msra.mxu0 0.0
        %465 = vmatprep.subr.mxu0 0.0
        %466 = vmatpush1.msra.mxu0 0.0
        %467 = vmatprep.subr.mxu0 0.0
        %468 = vmatpush1.msra.mxu0 0.0
        %469 = vmatprep.subr.mxu0 0.0
        %470 = vmatpush1.msra.mxu0 0.0
        %471 = vmatprep.subr.mxu0 0.0
        %472 = vmatpush1.msra.mxu0 0.0
        %473 = vmatprep.subr.mxu0 0.0
        %474 = vmatpush1.msra.mxu0 0.0
        %475 = vmatprep.subr.mxu0 0.0
        %476 = vmatpush1.msra.mxu0 0.0
        %477 = vmatprep.subr.mxu0 0.0
        %478 = vmatpush1.msra.mxu0 0.0
        %479 = vmatprep.subr.mxu0 0.0
        %480 = vmatpush1.msra.mxu0 0.0
        %481 = vmatprep.subr.mxu0 0.0
        %482 = vmatpush1.msra.mxu0 0.0
        %483 = vmatprep.subr.mxu0 0.0
        %484 = vmatpush1.msra.mxu0 0.0
        %485 = vmatprep.subr.mxu0 0.0
        %486 = vmatpush1.msra.mxu0 0.0
        %487 = vmatprep.subr.mxu0 0.0
        %488 = vmatpush1.msra.mxu0 0.0
        %489 = vmatprep.subr.mxu0 0.0
        %490 = vmatpush1.msra.mxu0 0.0
        %491 = vmatprep.subr.mxu0 0.0
        %492 = vmatpush1.msra.mxu0 0.0
        %493 = vmatprep.subr.mxu0 0.0
        %494 = vmatpush1.msra.mxu0 0.0
        %495 = vmatprep.subr.mxu0 0.0
        %496 = vmatpush1.msra.mxu0 0.0
        %497 = vmatprep.subr.mxu0 0.0
        %498 = vmatpush1.msra.mxu0 0.0
        %499 = vmatprep.subr.mxu0 0.0
        %500 = vmatpush1.msra.mxu0 0.0
        %501 = vmatprep.subr.mxu0 0.0
        %502 = vmatpush1.msra.mxu0 0.0
        %503 = vmatprep.subr.mxu0 0.0
        %504 = vmatpush1.msra.mxu0 0.0
        %505 = vmatprep.subr.mxu0 0.0
        %506 = vmatpush1.msra.mxu0 0.0
        %507 = vmatprep.subr.mxu0 0.0
        %508 = vmatpush1.msra.mxu0 0.0
        %509 = vmatprep.subr.mxu0 0.0
        %510 = vmatpush1.msra.mxu0 0.0
        %511 = vmatprep.subr.mxu0 0.0
        %512 = vmatpush1.msra.mxu0 0.0
        %513 = vmatprep.subr.mxu0 0.0
        %514 = vmatpush1.msra.mxu0 0.0
        %515 = vmatprep.subr.mxu0 0.0
        %516 = vmatpush1.msra.mxu0 0.0
        %517 = vmatprep.mubr.f32.mxu0 0.0
        %518 = vmatmul.mubr.f32.gmra.mrb[0].mxu0 %v451
        %v519 = vpop.f32.mrb[0].mxu0
        %v520 = vadd.f32 %v447, %v519
        %v521 = vpop.f32.mrb[0].mxu0
        %522 = vdwg.mxu0
        %s523 = scalar_lea.vmem [#allocation8], 32
        %v524 = vld [vmem:[%s523] sm:$0xff]
        %v525 = vld [vmem:[%s523 + $0x8] sm:$0xff]
        %v526 = vld [vmem:[%s523 + $0x10] sm:$0xff]
        %v527 = vld [vmem:[%s523 + $0x18] sm:$0xff]
        %s528 = scalar_lea.vmem [#allocation10], 1
        %v529 = vld [vmem:[%s528] sm:$0x1]
        %v531 = vlaneseq
        %v532 = vshrl.u32 %v531, 7
        %v533 = vsub.s32 0, %v532
        %v534 = vrot.slane %v529, %v533
        %v537 = vsel %vm449, %v436, 0
        %539 = vmatprep.subr.mxu0 0.0
        %540 = vmatpush1.msra.mxu0 %v524
        %541 = vmatprep.subr.mxu0 0.0
        %542 = vmatpush1.msra.mxu0 %v525
        %543 = vmatprep.subr.mxu0 0.0
        %544 = vmatpush1.msra.mxu0 %v526
        %545 = vmatprep.subr.mxu0 0.0
        %546 = vmatpush1.msra.mxu0 %v527
        %547 = vmatprep.subr.mxu0 0.0
        %548 = vmatpush1.msra.mxu0 0.0
        %549 = vmatprep.subr.mxu0 0.0
        %550 = vmatpush1.msra.mxu0 0.0
        %551 = vmatprep.subr.mxu0 0.0
        %552 = vmatpush1.msra.mxu0 0.0
        %553 = vmatprep.subr.mxu0 0.0
        %554 = vmatpush1.msra.mxu0 0.0
        %555 = vmatprep.subr.mxu0 0.0
        %556 = vmatpush1.msra.mxu0 0.0
        %557 = vmatprep.subr.mxu0 0.0
        %558 = vmatpush1.msra.mxu0 0.0
        %559 = vmatprep.subr.mxu0 0.0
        %560 = vmatpush1.msra.mxu0 0.0
        %561 = vmatprep.subr.mxu0 0.0
        %562 = vmatpush1.msra.mxu0 0.0
        %563 = vmatprep.subr.mxu0 0.0
        %564 = vmatpush1.msra.mxu0 0.0
        %565 = vmatprep.subr.mxu0 0.0
        %566 = vmatpush1.msra.mxu0 0.0
        %567 = vmatprep.subr.mxu0 0.0
        %568 = vmatpush1.msra.mxu0 0.0
        %569 = vmatprep.subr.mxu0 0.0
        %570 = vmatpush1.msra.mxu0 0.0
        %571 = vmatprep.subr.mxu0 0.0
        %572 = vmatpush1.msra.mxu0 0.0
        %573 = vmatprep.subr.mxu0 0.0
        %574 = vmatpush1.msra.mxu0 0.0
        %575 = vmatprep.subr.mxu0 0.0
        %576 = vmatpush1.msra.mxu0 0.0
        %577 = vmatprep.subr.mxu0 0.0
        %578 = vmatpush1.msra.mxu0 0.0
        %579 = vmatprep.subr.mxu0 0.0
        %580 = vmatpush1.msra.mxu0 0.0
        %581 = vmatprep.subr.mxu0 0.0
        %582 = vmatpush1.msra.mxu0 0.0
        %583 = vmatprep.subr.mxu0 0.0
        %584 = vmatpush1.msra.mxu0 0.0
        %585 = vmatprep.subr.mxu0 0.0
        %586 = vmatpush1.msra.mxu0 0.0
        %587 = vmatprep.subr.mxu0 0.0
        %588 = vmatpush1.msra.mxu0 0.0
        %589 = vmatprep.subr.mxu0 0.0
        %590 = vmatpush1.msra.mxu0 0.0
        %591 = vmatprep.subr.mxu0 0.0
        %592 = vmatpush1.msra.mxu0 0.0
        %593 = vmatprep.subr.mxu0 0.0
        %594 = vmatpush1.msra.mxu0 0.0
        %595 = vmatprep.subr.mxu0 0.0
        %596 = vmatpush1.msra.mxu0 0.0
        %597 = vmatprep.subr.mxu0 0.0
        %598 = vmatpush1.msra.mxu0 0.0
        %599 = vmatprep.subr.mxu0 0.0
        %600 = vmatpush1.msra.mxu0 0.0
        %601 = vmatprep.subr.mxu0 0.0
        %602 = vmatpush1.msra.mxu0 0.0
        %603 = vmatprep.mubr.f32.mxu0 0.0
        %604 = vmatmul.mubr.f32.gmra.mrb[0].mxu0 %v537
        %v605 = vpop.f32.mrb[0].mxu0
        %v606 = vadd.f32 %v534, %v605
        %v607 = vpop.f32.mrb[0].mxu0
        %608 = vdwg.mxu0
        %s609 = scalar_lea.vmem [#allocation8], 64
        %v610 = vld [vmem:[%s609] sm:$0xff]
        %v611 = vld [vmem:[%s609 + $0x8] sm:$0xff]
        %v612 = vld [vmem:[%s609 + $0x10] sm:$0xff]
        %v613 = vld [vmem:[%s609 + $0x18] sm:$0xff]
        %s614 = scalar_lea.vmem [#allocation10], 2
        %v615 = vld [vmem:[%s614] sm:$0x1]
        %v617 = vlaneseq
        %v618 = vshrl.u32 %v617, 7
        %v619 = vsub.s32 0, %v618
        %v620 = vrot.slane %v615, %v619
        %v623 = vsel %vm449, %v437, 0
        %625 = vmatprep.subr.mxu0 0.0
        %626 = vmatpush1.msra.mxu0 %v610
        %627 = vmatprep.subr.mxu0 0.0
        %628 = vmatpush1.msra.mxu0 %v611
        %629 = vmatprep.subr.mxu0 0.0
        %630 = vmatpush1.msra.mxu0 %v612
        %631 = vmatprep.subr.mxu0 0.0
        %632 = vmatpush1.msra.mxu0 %v613
        %633 = vmatprep.subr.mxu0 0.0
        %634 = vmatpush1.msra.mxu0 0.0
        %635 = vmatprep.subr.mxu0 0.0
        %636 = vmatpush1.msra.mxu0 0.0
        %637 = vmatprep.subr.mxu0 0.0
        %638 = vmatpush1.msra.mxu0 0.0
        %639 = vmatprep.subr.mxu0 0.0
        %640 = vmatpush1.msra.mxu0 0.0
        %641 = vmatprep.subr.mxu0 0.0
        %642 = vmatpush1.msra.mxu0 0.0
        %643 = vmatprep.subr.mxu0 0.0
        %644 = vmatpush1.msra.mxu0 0.0
        %645 = vmatprep.subr.mxu0 0.0
        %646 = vmatpush1.msra.mxu0 0.0
        %647 = vmatprep.subr.mxu0 0.0
        %648 = vmatpush1.msra.mxu0 0.0
        %649 = vmatprep.subr.mxu0 0.0
        %650 = vmatpush1.msra.mxu0 0.0
        %651 = vmatprep.subr.mxu0 0.0
        %652 = vmatpush1.msra.mxu0 0.0
        %653 = vmatprep.subr.mxu0 0.0
        %654 = vmatpush1.msra.mxu0 0.0
        %655 = vmatprep.subr.mxu0 0.0
        %656 = vmatpush1.msra.mxu0 0.0
        %657 = vmatprep.subr.mxu0 0.0
        %658 = vmatpush1.msra.mxu0 0.0
        %659 = vmatprep.subr.mxu0 0.0
        %660 = vmatpush1.msra.mxu0 0.0
        %661 = vmatprep.subr.mxu0 0.0
        %662 = vmatpush1.msra.mxu0 0.0
        %663 = vmatprep.subr.mxu0 0.0
        %664 = vmatpush1.msra.mxu0 0.0
        %665 = vmatprep.subr.mxu0 0.0
        %666 = vmatpush1.msra.mxu0 0.0
        %667 = vmatprep.subr.mxu0 0.0
        %668 = vmatpush1.msra.mxu0 0.0
        %669 = vmatprep.subr.mxu0 0.0
        %670 = vmatpush1.msra.mxu0 0.0
        %671 = vmatprep.subr.mxu0 0.0
        %672 = vmatpush1.msra.mxu0 0.0
        %673 = vmatprep.subr.mxu0 0.0
        %674 = vmatpush1.msra.mxu0 0.0
        %675 = vmatprep.subr.mxu0 0.0
        %676 = vmatpush1.msra.mxu0 0.0
        %677 = vmatprep.subr.mxu0 0.0
        %678 = vmatpush1.msra.mxu0 0.0
        %679 = vmatprep.subr.mxu0 0.0
        %680 = vmatpush1.msra.mxu0 0.0
        %681 = vmatprep.subr.mxu0 0.0
        %682 = vmatpush1.msra.mxu0 0.0
        %683 = vmatprep.subr.mxu0 0.0
        %684 = vmatpush1.msra.mxu0 0.0
        %685 = vmatprep.subr.mxu0 0.0
        %686 = vmatpush1.msra.mxu0 0.0
        %687 = vmatprep.subr.mxu0 0.0
        %688 = vmatpush1.msra.mxu0 0.0
        %689 = vmatprep.mubr.f32.mxu0 0.0
        %690 = vmatmul.mubr.f32.gmra.mrb[0].mxu0 %v623
        %v691 = vpop.f32.mrb[0].mxu0
        %v692 = vadd.f32 %v620, %v691
        %v693 = vpop.f32.mrb[0].mxu0
        %694 = vdwg.mxu0
        %v695 = vld [vmem:[%s4] sm:$0xff]
        %v696 = vld [vmem:[%s4 + $0x8] sm:$0x7f]
        %s697 = scalar_lea.vmem [#allocation8], 96
        %v698 = vld [vmem:[%s697] sm:$0xff]
        %v699 = vld [vmem:[%s697 + $0x8] sm:$0xff]
        %v700 = vld [vmem:[%s697 + $0x10] sm:$0xff]
        %v701 = vld [vmem:[%s697 + $0x18] sm:$0xff]
        %s702 = scalar_lea.vmem [#allocation10], 3
        %v703 = vld [vmem:[%s702] sm:$0x1]
        %v705 = vlaneseq
        %v706 = vshrl.u32 %v705, 7
        %v707 = vsub.s32 0, %v706
        %v708 = vrot.slane %v703, %v707
        %v711 = vsel %vm449, %v695, 0
        %v714 = vsel %vm449, %v696, 0
        %716 = vmatprep.subr.mxu0 0.0
        %717 = vmatpush1.msra.mxu0 %v698
        %718 = vmatprep.subr.mxu0 0.0
        %719 = vmatpush1.msra.mxu0 %v699
        %720 = vmatprep.subr.mxu0 0.0
        %721 = vmatpush1.msra.mxu0 %v700
        %722 = vmatprep.subr.mxu0 0.0
        %723 = vmatpush1.msra.mxu0 %v701
        %724 = vmatprep.subr.mxu0 0.0
        %725 = vmatpush1.msra.mxu0 0.0
        %726 = vmatprep.subr.mxu0 0.0
        %727 = vmatpush1.msra.mxu0 0.0
        %728 = vmatprep.subr.mxu0 0.0
        %729 = vmatpush1.msra.mxu0 0.0
        %730 = vmatprep.subr.mxu0 0.0
        %731 = vmatpush1.msra.mxu0 0.0
        %732 = vmatprep.subr.mxu0 0.0
        %733 = vmatpush1.msra.mxu0 0.0
        %734 = vmatprep.subr.mxu0 0.0
        %735 = vmatpush1.msra.mxu0 0.0
        %736 = vmatprep.subr.mxu0 0.0
        %737 = vmatpush1.msra.mxu0 0.0
        %738 = vmatprep.subr.mxu0 0.0
        %739 = vmatpush1.msra.mxu0 0.0
        %740 = vmatprep.subr.mxu0 0.0
        %741 = vmatpush1.msra.mxu0 0.0
        %742 = vmatprep.subr.mxu0 0.0
        %743 = vmatpush1.msra.mxu0 0.0
        %744 = vmatprep.subr.mxu0 0.0
        %745 = vmatpush1.msra.mxu0 0.0
        %746 = vmatprep.subr.mxu0 0.0
        %747 = vmatpush1.msra.mxu0 0.0
        %748 = vmatprep.subr.mxu0 0.0
        %749 = vmatpush1.msra.mxu0 0.0
        %750 = vmatprep.subr.mxu0 0.0
        %751 = vmatpush1.msra.mxu0 0.0
        %752 = vmatprep.subr.mxu0 0.0
        %753 = vmatpush1.msra.mxu0 0.0
        %754 = vmatprep.subr.mxu0 0.0
        %755 = vmatpush1.msra.mxu0 0.0
        %756 = vmatprep.subr.mxu0 0.0
        %757 = vmatpush1.msra.mxu0 0.0
        %758 = vmatprep.subr.mxu0 0.0
        %759 = vmatpush1.msra.mxu0 0.0
        %760 = vmatprep.subr.mxu0 0.0
        %761 = vmatpush1.msra.mxu0 0.0
        %762 = vmatprep.subr.mxu0 0.0
        %763 = vmatpush1.msra.mxu0 0.0
        %764 = vmatprep.subr.mxu0 0.0
        %765 = vmatpush1.msra.mxu0 0.0
        %766 = vmatprep.subr.mxu0 0.0
        %767 = vmatpush1.msra.mxu0 0.0
        %768 = vmatprep.subr.mxu0 0.0
        %769 = vmatpush1.msra.mxu0 0.0
        %770 = vmatprep.subr.mxu0 0.0
        %771 = vmatpush1.msra.mxu0 0.0
        %772 = vmatprep.subr.mxu0 0.0
        %773 = vmatpush1.msra.mxu0 0.0
        %774 = vmatprep.subr.mxu0 0.0
        %775 = vmatpush1.msra.mxu0 0.0
        %776 = vmatprep.subr.mxu0 0.0
        %777 = vmatpush1.msra.mxu0 0.0
        %778 = vmatprep.subr.mxu0 0.0
        %779 = vmatpush1.msra.mxu0 0.0
        %780 = vmatprep.mubr.f32.mxu0 0.0
        %781 = vmatmul.mubr.f32.gmra.mrb[0].mxu0 %v711
        %v782 = vpop.f32.mrb[0].mxu0
        %v783 = vadd.f32 %v708, %v782
        %v784 = vpop.f32.mrb[0].mxu0
        %785 = vmatprep.mubr.f32.mxu0 0.0
        %786 = vmatmul.mubr.f32.gmra.mrb[0].mxu0 %v714
        %v787 = vpop.f32.mrb[0].mxu0
        %v788 = vadd.f32 %v708, %v787
        %v789 = vpop.f32.mrb[0].mxu0
        %790 = vdwg.mxu0
        %v791 = vld [vmem:[%s7] sm:$0x1]
        %v793 = vlaneseq
        %v794 = vshrl.u32 %v793, 7
        %v795 = vsub.s32 0, %v794
        %v796 = vrot.slane %v791, %v795
        %v798 = vadd.f32 %v520, %v796
        %s799 = scalar_lea.vmem %s7, 1
        %v800 = vld [vmem:[%s799] sm:$0x1]
        %v802 = vlaneseq
        %v803 = vshrl.u32 %v802, 7
        %v804 = vsub.s32 0, %v803
        %v805 = vrot.slane %v800, %v804
        %v807 = vadd.f32 %v520, %v805
        %v808 = vld [vmem:[%s434] sm:$0x1]
        %vm809 = vcmp.eq.s32.totalorder %v808, 0
        %vm810 = vcmask 64512
        %v812 = vsel %vm810, %v807, 0
        %v815 = vsel %vm810, %v783, 0
        %v818 = vsel %vm810, %v788, 0
        %820 = vmatprep.subr.mxu0 0.0
        %821 = vmatpush1.xpose.msra.mxu0 %v815
        %822 = vmatprep.subr.mxu0 0.0
        %823 = vmatpush1.xpose.msra.mxu0 %v818
        %824 = vmatprep.subr.mxu0 0.0
        %825 = vmatpush1.xpose.msra.mxu0 0.0
        %826 = vmatprep.subr.mxu0 0.0
        %827 = vmatpush1.xpose.msra.mxu0 0.0
        %828 = vmatprep.subr.mxu0 0.0
        %829 = vmatpush1.xpose.msra.mxu0 0.0
        %830 = vmatprep.subr.mxu0 0.0
        %831 = vmatpush1.xpose.msra.mxu0 0.0
        %832 = vmatprep.subr.mxu0 0.0
        %833 = vmatpush1.xpose.msra.mxu0 0.0
        %834 = vmatprep.subr.mxu0 0.0
        %835 = vmatpush1.xpose.msra.mxu0 0.0
        %836 = vmatprep.subr.mxu0 0.0
        %837 = vmatpush1.xpose.msra.mxu0 0.0
        %838 = vmatprep.subr.mxu0 0.0
        %839 = vmatpush1.xpose.msra.mxu0 0.0
        %840 = vmatprep.subr.mxu0 0.0
        %841 = vmatpush1.xpose.msra.mxu0 0.0
        %842 = vmatprep.subr.mxu0 0.0
        %843 = vmatpush1.xpose.msra.mxu0 0.0
        %844 = vmatprep.subr.mxu0 0.0
        %845 = vmatpush1.xpose.msra.mxu0 0.0
        %846 = vmatprep.subr.mxu0 0.0
        %847 = vmatpush1.xpose.msra.mxu0 0.0
        %848 = vmatprep.subr.mxu0 0.0
        %849 = vmatpush1.xpose.msra.mxu0 0.0
        %850 = vmatprep.subr.mxu0 0.0
        %851 = vmatpush1.xpose.msra.mxu0 0.0
        %852 = vmatprep.subr.mxu0 0.0
        %853 = vmatpush1.xpose.msra.mxu0 0.0
        %854 = vmatprep.subr.mxu0 0.0
        %855 = vmatpush1.xpose.msra.mxu0 0.0
        %856 = vmatprep.subr.mxu0 0.0
        %857 = vmatpush1.xpose.msra.mxu0 0.0
        %858 = vmatprep.subr.mxu0 0.0
        %859 = vmatpush1.xpose.msra.mxu0 0.0
        %860 = vmatprep.subr.mxu0 0.0
        %861 = vmatpush1.xpose.msra.mxu0 0.0
        %862 = vmatprep.subr.mxu0 0.0
        %863 = vmatpush1.xpose.msra.mxu0 0.0
        %864 = vmatprep.subr.mxu0 0.0
        %865 = vmatpush1.xpose.msra.mxu0 0.0
        %866 = vmatprep.subr.mxu0 0.0
        %867 = vmatpush1.xpose.msra.mxu0 0.0
        %868 = vmatprep.subr.mxu0 0.0
        %869 = vmatpush1.xpose.msra.mxu0 0.0
        %870 = vmatprep.subr.mxu0 0.0
        %871 = vmatpush1.xpose.msra.mxu0 0.0
        %872 = vmatprep.subr.mxu0 0.0
        %873 = vmatpush1.xpose.msra.mxu0 0.0
        %874 = vmatprep.subr.mxu0 0.0
        %875 = vmatpush1.xpose.msra.mxu0 0.0
        %876 = vmatprep.subr.mxu0 0.0
        %877 = vmatpush1.xpose.msra.mxu0 0.0
        %878 = vmatprep.subr.mxu0 0.0
        %879 = vmatpush1.xpose.msra.mxu0 0.0
        %880 = vmatprep.subr.mxu0 0.0
        %881 = vmatpush1.xpose.msra.mxu0 0.0
        %882 = vmatprep.subr.mxu0 0.0
        %883 = vmatpush1.xpose.msra.mxu0 0.0
        %884 = vmatprep.mubr.f32.mxu0 0.0
        %885 = vmatmul.mubr.f32.gmra.mrb[0].mxu0 %v812
        %v886 = vpop.f32.mrb[0].mxu0
        %v887 = vadd.f32 0.0, %v886
        %v888 = vpop.f32.mrb[0].mxu0
        %889 = vdwg.mxu0
        %891 = vrot.lane.b32.xlu0 %v887, 1
        %v892 = vpop.permute.xlu0 %891
        %894 = vrot.lane.b32.xlu0 %v887, 2
        %v895 = vpop.permute.xlu0 %894
        %897 = vrot.lane.b32.xlu0 %v887, 3
        %v898 = vpop.permute.xlu0 %897
        %900 = vrot.lane.b32.xlu0 %v887, 4
        %v901 = vpop.permute.xlu0 %900
        %903 = vrot.lane.b32.xlu0 %v887, 5
        %v904 = vpop.permute.xlu0 %903
        %906 = vrot.lane.b32.xlu0 %v887, 6
        %v907 = vpop.permute.xlu0 %906
        %909 = vrot.lane.b32.xlu0 %v887, 7
        %v910 = vpop.permute.xlu0 %909
        %vm912 = vcmask 1040384
        %v913 = vsel %vm912, %v887, %v892
        %vm914 = vcmask 1041408
        %v915 = vsel %vm914, %v913, %v895
        %vm916 = vcmask 1042432
        %v917 = vsel %vm916, %v915, %v898
        %vm918 = vcmask 1043456
        %v919 = vsel %vm918, %v917, %v901
        %vm920 = vcmask 1044480
        %v921 = vsel %vm920, %v919, %v904
        %vm922 = vcmask 1045504
        %v923 = vsel %vm922, %v921, %v907
        %vm924 = vcmask 1046528
        %v925 = vsel %vm924, %v923, %v910
        %927 = vrot.lane.b32.xlu0 %v925, 121
        %v928 = vpop.permute.xlu0 %927
        %v931 = vsel %vm810, %v798, 0
        %v934 = vsel %vm810, %v606, 0
        %936 = vmatprep.subr.mxu0 0.0
        %937 = vmatpush1.xpose.msra.mxu0 %v934
        %938 = vmatprep.subr.mxu0 0.0
        %939 = vmatpush1.xpose.msra.mxu0 0.0
        %940 = vmatprep.subr.mxu0 0.0
        %941 = vmatpush1.xpose.msra.mxu0 0.0
        %942 = vmatprep.subr.mxu0 0.0
        %943 = vmatpush1.xpose.msra.mxu0 0.0
        %944 = vmatprep.subr.mxu0 0.0
        %945 = vmatpush1.xpose.msra.mxu0 0.0
        %946 = vmatprep.subr.mxu0 0.0
        %947 = vmatpush1.xpose.msra.mxu0 0.0
        %948 = vmatprep.subr.mxu0 0.0
        %949 = vmatpush1.xpose.msra.mxu0 0.0
        %950 = vmatprep.subr.mxu0 0.0
        %951 = vmatpush1.xpose.msra.mxu0 0.0
        %952 = vmatprep.subr.mxu0 0.0
        %953 = vmatpush1.xpose.msra.mxu0 0.0
        %954 = vmatprep.subr.mxu0 0.0
        %955 = vmatpush1.xpose.msra.mxu0 0.0
        %956 = vmatprep.subr.mxu0 0.0
        %957 = vmatpush1.xpose.msra.mxu0 0.0
        %958 = vmatprep.subr.mxu0 0.0
        %959 = vmatpush1.xpose.msra.mxu0 0.0
        %960 = vmatprep.subr.mxu0 0.0
        %961 = vmatpush1.xpose.msra.mxu0 0.0
        %962 = vmatprep.subr.mxu0 0.0
        %963 = vmatpush1.xpose.msra.mxu0 0.0
        %964 = vmatprep.subr.mxu0 0.0
        %965 = vmatpush1.xpose.msra.mxu0 0.0
        %966 = vmatprep.subr.mxu0 0.0
        %967 = vmatpush1.xpose.msra.mxu0 0.0
        %968 = vmatprep.subr.mxu0 0.0
        %969 = vmatpush1.xpose.msra.mxu0 0.0
        %970 = vmatprep.subr.mxu0 0.0
        %971 = vmatpush1.xpose.msra.mxu0 0.0
        %972 = vmatprep.subr.mxu0 0.0
        %973 = vmatpush1.xpose.msra.mxu0 0.0
        %974 = vmatprep.subr.mxu0 0.0
        %975 = vmatpush1.xpose.msra.mxu0 0.0
        %976 = vmatprep.subr.mxu0 0.0
        %977 = vmatpush1.xpose.msra.mxu0 0.0
        %978 = vmatprep.subr.mxu0 0.0
        %979 = vmatpush1.xpose.msra.mxu0 0.0
        %980 = vmatprep.subr.mxu0 0.0
        %981 = vmatpush1.xpose.msra.mxu0 0.0
        %982 = vmatprep.subr.mxu0 0.0
        %983 = vmatpush1.xpose.msra.mxu0 0.0
        %984 = vmatprep.subr.mxu0 0.0
        %985 = vmatpush1.xpose.msra.mxu0 0.0
        %986 = vmatprep.subr.mxu0 0.0
        %987 = vmatpush1.xpose.msra.mxu0 0.0
        %988 = vmatprep.subr.mxu0 0.0
        %989 = vmatpush1.xpose.msra.mxu0 0.0
        %990 = vmatprep.subr.mxu0 0.0
        %991 = vmatpush1.xpose.msra.mxu0 0.0
        %992 = vmatprep.subr.mxu0 0.0
        %993 = vmatpush1.xpose.msra.mxu0 0.0
        %994 = vmatprep.subr.mxu0 0.0
        %995 = vmatpush1.xpose.msra.mxu0 0.0
        %996 = vmatprep.subr.mxu0 0.0
        %997 = vmatpush1.xpose.msra.mxu0 0.0
        %998 = vmatprep.subr.mxu0 0.0
        %999 = vmatpush1.xpose.msra.mxu0 0.0
        %1000 = vmatprep.mubr.f32.mxu0 0.0
        %1001 = vmatmul.mubr.f32.gmra.mrb[0].mxu0 %v931
        %v1002 = vpop.f32.mrb[0].mxu0
        %v1003 = vadd.f32 %v928, %v1002
        %v1004 = vpop.f32.mrb[0].mxu0
        %1005 = vdwg.mxu0
        %v1006 = vmul.f32 %v1003, 0.35355338
        %v1007 = vsel %vm809, 1, 0
        %v1008 = vlaneseq
        %v1009 = vshrl.u32 %v1008, 7
        %v1010 = vsub.s32 0, %v1009
        %v1011 = vrot.slane %v1007, %v1010
        %vm1012 = vcmp.eq.s32.totalorder %v1011, 1
        %v1013 = vsel %vm1012, -3.4028235e+38, %v1006
        %v1014 = vsel %vm810, %v1013, -inf
        %1015 = vmax.xlane.f32.xlu0 %v1014
        %v1016 = vpop.xlane.xlu0 %1015
        %v1017 = vsub.f32 %v1013, %v1016
        %v1018 = vmul.f32 %v1017, 1.442695
        %v1019 = vpow.pop %v1018
        %v1020 = vsel %vm810, %v1019, 0.0
        %1021 = vadd.xlane.f32.xlu0 %v1020
        %v1022 = vpop.xlane.xlu0 %1021
        %v1023 = vrcp.pop %v1022
        %v1024 = vmul.f32 %v1019, %v1023
        %v1025 = vsel %vm1012, 0.0, %v1024
        %v1027 = vsel %vm810, %v1025, 0
        %1029 = vmatprep.subr.mxu0 0.0
        %1030 = vmatpush1.msra.mxu0 %v692
        %1031 = vmatprep.subr.mxu0 0.0
        %1032 = vmatpush1.msra.mxu0 0.0
        %1033 = vmatprep.subr.mxu0 0.0
        %1034 = vmatpush1.msra.mxu0 0.0
        %1035 = vmatprep.subr.mxu0 0.0
        %1036 = vmatpush1.msra.mxu0 0.0
        %1037 = vmatprep.subr.mxu0 0.0
        %1038 = vmatpush1.msra.mxu0 0.0
        %1039 = vmatprep.subr.mxu0 0.0
        %1040 = vmatpush1.msra.mxu0 0.0
        %1041 = vmatprep.subr.mxu0 0.0
        %1042 = vmatpush1.msra.mxu0 0.0
        %1043 = vmatprep.subr.mxu0 0.0
        %1044 = vmatpush1.msra.mxu0 0.0
        %1045 = vmatprep.subr.mxu0 0.0
        %1046 = vmatpush1.msra.mxu0 0.0
        %1047 = vmatprep.subr.mxu0 0.0
        %1048 = vmatpush1.msra.mxu0 0.0
        %1049 = vmatprep.subr.mxu0 0.0
        %1050 = vmatpush1.msra.mxu0 0.0
        %1051 = vmatprep.subr.mxu0 0.0
        %1052 = vmatpush1.msra.mxu0 0.0
        %1053 = vmatprep.subr.mxu0 0.0
        %1054 = vmatpush1.msra.mxu0 0.0
        %1055 = vmatprep.subr.mxu0 0.0
        %1056 = vmatpush1.msra.mxu0 0.0
        %1057 = vmatprep.subr.mxu0 0.0
        %1058 = vmatpush1.msra.mxu0 0.0
        %1059 = vmatprep.subr.mxu0 0.0
        %1060 = vmatpush1.msra.mxu0 0.0
        %1061 = vmatprep.subr.mxu0 0.0
        %1062 = vmatpush1.msra.mxu0 0.0
        %1063 = vmatprep.subr.mxu0 0.0
        %1064 = vmatpush1.msra.mxu0 0.0
        %1065 = vmatprep.subr.mxu0 0.0
        %1066 = vmatpush1.msra.mxu0 0.0
        %1067 = vmatprep.subr.mxu0 0.0
        %1068 = vmatpush1.msra.mxu0 0.0
        %1069 = vmatprep.subr.mxu0 0.0
        %1070 = vmatpush1.msra.mxu0 0.0
        %1071 = vmatprep.subr.mxu0 0.0
        %1072 = vmatpush1.msra.mxu0 0.0
        %1073 = vmatprep.subr.mxu0 0.0
        %1074 = vmatpush1.msra.mxu0 0.0
        %1075 = vmatprep.subr.mxu0 0.0
        %1076 = vmatpush1.msra.mxu0 0.0
        %1077 = vmatprep.subr.mxu0 0.0
        %1078 = vmatpush1.msra.mxu0 0.0
        %1079 = vmatprep.subr.mxu0 0.0
        %1080 = vmatpush1.msra.mxu0 0.0
        %1081 = vmatprep.subr.mxu0 0.0
        %1082 = vmatpush1.msra.mxu0 0.0
        %1083 = vmatprep.subr.mxu0 0.0
        %1084 = vmatpush1.msra.mxu0 0.0
        %1085 = vmatprep.subr.mxu0 0.0
        %1086 = vmatpush1.msra.mxu0 0.0
        %1087 = vmatprep.subr.mxu0 0.0
        %1088 = vmatpush1.msra.mxu0 0.0
        %1089 = vmatprep.subr.mxu0 0.0
        %1090 = vmatpush1.msra.mxu0 0.0
        %1091 = vmatprep.subr.mxu0 0.0
        %1092 = vmatpush1.msra.mxu0 0.0
        %1093 = vmatprep.mubr.f32.mxu0 0.0
        %1094 = vmatmul.mubr.f32.gmra.mrb[0].mxu0 %v1027
        %v1095 = vpop.f32.mrb[0].mxu0
        %v1096 = vadd.f32 0.0, %v1095
        %v1097 = vpop.f32.mrb[0].mxu0
        %1098 = vdwg.mxu0
        %1099 = vrot.lane.b32.xlu0 %v807, 120
        %v1100 = vpop.permute.xlu0 %1099
        %1101 = vrot.lane.b32.xlu0 %v783, 120
        %v1102 = vpop.permute.xlu0 %1101
        %1103 = vrot.lane.b32.xlu0 %v788, 120
        %v1104 = vpop.permute.xlu0 %1103
        %v1105 = vsel %vm810, %v1100, 0
        %v1107 = vsel %vm810, %v1102, 0
        %v1109 = vsel %vm810, %v1104, 0
        %1111 = vmatprep.subr.mxu0 0.0
        %1112 = vmatpush1.xpose.msra.mxu0 %v1107
        %1113 = vmatprep.subr.mxu0 0.0
        %1114 = vmatpush1.xpose.msra.mxu0 %v1109
        %1115 = vmatprep.subr.mxu0 0.0
        %1116 = vmatpush1.xpose.msra.mxu0 0.0
        %1117 = vmatprep.subr.mxu0 0.0
        %1118 = vmatpush1.xpose.msra.mxu0 0.0
        %1119 = vmatprep.subr.mxu0 0.0
        %1120 = vmatpush1.xpose.msra.mxu0 0.0
        %1121 = vmatprep.subr.mxu0 0.0
        %1122 = vmatpush1.xpose.msra.mxu0 0.0
        %1123 = vmatprep.subr.mxu0 0.0
        %1124 = vmatpush1.xpose.msra.mxu0 0.0
        %1125 = vmatprep.subr.mxu0 0.0
        %1126 = vmatpush1.xpose.msra.mxu0 0.0
        %1127 = vmatprep.subr.mxu0 0.0
        %1128 = vmatpush1.xpose.msra.mxu0 0.0
        %1129 = vmatprep.subr.mxu0 0.0
        %1130 = vmatpush1.xpose.msra.mxu0 0.0
        %1131 = vmatprep.subr.mxu0 0.0
        %1132 = vmatpush1.xpose.msra.mxu0 0.0
        %1133 = vmatprep.subr.mxu0 0.0
        %1134 = vmatpush1.xpose.msra.mxu0 0.0
        %1135 = vmatprep.subr.mxu0 0.0
        %1136 = vmatpush1.xpose.msra.mxu0 0.0
        %1137 = vmatprep.subr.mxu0 0.0
        %1138 = vmatpush1.xpose.msra.mxu0 0.0
        %1139 = vmatprep.subr.mxu0 0.0
        %1140 = vmatpush1.xpose.msra.mxu0 0.0
        %1141 = vmatprep.subr.mxu0 0.0
        %1142 = vmatpush1.xpose.msra.mxu0 0.0
        %1143 = vmatprep.subr.mxu0 0.0
        %1144 = vmatpush1.xpose.msra.mxu0 0.0
        %1145 = vmatprep.subr.mxu0 0.0
        %1146 = vmatpush1.xpose.msra.mxu0 0.0
        %1147 = vmatprep.subr.mxu0 0.0
        %1148 = vmatpush1.xpose.msra.mxu0 0.0
        %1149 = vmatprep.subr.mxu0 0.0
        %1150 = vmatpush1.xpose.msra.mxu0 0.0
        %1151 = vmatprep.subr.mxu0 0.0
        %1152 = vmatpush1.xpose.msra.mxu0 0.0
        %1153 = vmatprep.subr.mxu0 0.0
        %1154 = vmatpush1.xpose.msra.mxu0 0.0
        %1155 = vmatprep.subr.mxu0 0.0
        %1156 = vmatpush1.xpose.msra.mxu0 0.0
        %1157 = vmatprep.subr.mxu0 0.0
        %1158 = vmatpush1.xpose.msra.mxu0 0.0
        %1159 = vmatprep.subr.mxu0 0.0
        %1160 = vmatpush1.xpose.msra.mxu0 0.0
        %1161 = vmatprep.subr.mxu0 0.0
        %1162 = vmatpush1.xpose.msra.mxu0 0.0
        %1163 = vmatprep.subr.mxu0 0.0
        %1164 = vmatpush1.xpose.msra.mxu0 0.0
        %1165 = vmatprep.subr.mxu0 0.0
        %1166 = vmatpush1.xpose.msra.mxu0 0.0
        %1167 = vmatprep.subr.mxu0 0.0
        %1168 = vmatpush1.xpose.msra.mxu0 0.0
        %1169 = vmatprep.subr.mxu0 0.0
        %1170 = vmatpush1.xpose.msra.mxu0 0.0
        %1171 = vmatprep.subr.mxu0 0.0
        %1172 = vmatpush1.xpose.msra.mxu0 0.0
        %1173 = vmatprep.subr.mxu0 0.0
        %1174 = vmatpush1.xpose.msra.mxu0 0.0
        %1175 = vmatprep.mubr.f32.mxu0 0.0
        %1176 = vmatmul.mubr.f32.gmra.mrb[0].mxu0 %v1105
        %v1177 = vpop.f32.mrb[0].mxu0
        %v1178 = vadd.f32 0.0, %v1177
        %v1179 = vpop.f32.mrb[0].mxu0
        %1180 = vdwg.mxu0
        %1182 = vrot.lane.b32.xlu0 %v1178, 1
        %v1183 = vpop.permute.xlu0 %1182
        %1185 = vrot.lane.b32.xlu0 %v1178, 2
        %v1186 = vpop.permute.xlu0 %1185
        %1188 = vrot.lane.b32.xlu0 %v1178, 3
        %v1189 = vpop.permute.xlu0 %1188
        %1191 = vrot.lane.b32.xlu0 %v1178, 4
        %v1192 = vpop.permute.xlu0 %1191
        %1194 = vrot.lane.b32.xlu0 %v1178, 5
        %v1195 = vpop.permute.xlu0 %1194
        %1197 = vrot.lane.b32.xlu0 %v1178, 6
        %v1198 = vpop.permute.xlu0 %1197
        %1200 = vrot.lane.b32.xlu0 %v1178, 7
        %v1201 = vpop.permute.xlu0 %1200
        %v1203 = vsel %vm912, %v1178, %v1183
        %v1204 = vsel %vm914, %v1203, %v1186
        %v1205 = vsel %vm916, %v1204, %v1189
        %v1206 = vsel %vm918, %v1205, %v1192
        %v1207 = vsel %vm920, %v1206, %v1195
        %v1208 = vsel %vm922, %v1207, %v1198
        %v1209 = vsel %vm924, %v1208, %v1201
        %1210 = vrot.lane.b32.xlu0 %v798, 120
        %v1211 = vpop.permute.xlu0 %1210
        %1212 = vrot.lane.b32.xlu0 %v606, 120
        %v1213 = vpop.permute.xlu0 %1212
        %1215 = vrot.lane.b32.xlu0 %v1209, 121
        %v1216 = vpop.permute.xlu0 %1215
        %v1218 = vsel %vm810, %v1211, 0
        %v1220 = vsel %vm810, %v1213, 0
        %1222 = vmatprep.subr.mxu0 0.0
        %1223 = vmatpush1.xpose.msra.mxu0 %v1220
        %1224 = vmatprep.subr.mxu0 0.0
        %1225 = vmatpush1.xpose.msra.mxu0 0.0
        %1226 = vmatprep.subr.mxu0 0.0
        %1227 = vmatpush1.xpose.msra.mxu0 0.0
        %1228 = vmatprep.subr.mxu0 0.0
        %1229 = vmatpush1.xpose.msra.mxu0 0.0
        %1230 = vmatprep.subr.mxu0 0.0
        %1231 = vmatpush1.xpose.msra.mxu0 0.0
        %1232 = vmatprep.subr.mxu0 0.0
        %1233 = vmatpush1.xpose.msra.mxu0 0.0
        %1234 = vmatprep.subr.mxu0 0.0
        %1235 = vmatpush1.xpose.msra.mxu0 0.0
        %1236 = vmatprep.subr.mxu0 0.0
        %1237 = vmatpush1.xpose.msra.mxu0 0.0
        %1238 = vmatprep.subr.mxu0 0.0
        %1239 = vmatpush1.xpose.msra.mxu0 0.0
        %1240 = vmatprep.subr.mxu0 0.0
        %1241 = vmatpush1.xpose.msra.mxu0 0.0
        %1242 = vmatprep.subr.mxu0 0.0
        %1243 = vmatpush1.xpose.msra.mxu0 0.0
        %1244 = vmatprep.subr.mxu0 0.0
        %1245 = vmatpush1.xpose.msra.mxu0 0.0
        %1246 = vmatprep.subr.mxu0 0.0
        %1247 = vmatpush1.xpose.msra.mxu0 0.0
        %1248 = vmatprep.subr.mxu0 0.0
        %1249 = vmatpush1.xpose.msra.mxu0 0.0
        %1250 = vmatprep.subr.mxu0 0.0
        %1251 = vmatpush1.xpose.msra.mxu0 0.0
        %1252 = vmatprep.subr.mxu0 0.0
        %1253 = vmatpush1.xpose.msra.mxu0 0.0
        %1254 = vmatprep.subr.mxu0 0.0
        %1255 = vmatpush1.xpose.msra.mxu0 0.0
        %1256 = vmatprep.subr.mxu0 0.0
        %1257 = vmatpush1.xpose.msra.mxu0 0.0
        %1258 = vmatprep.subr.mxu0 0.0
        %1259 = vmatpush1.xpose.msra.mxu0 0.0
        %1260 = vmatprep.subr.mxu0 0.0
        %1261 = vmatpush1.xpose.msra.mxu0 0.0
        %1262 = vmatprep.subr.mxu0 0.0
        %1263 = vmatpush1.xpose.msra.mxu0 0.0
        %1264 = vmatprep.subr.mxu0 0.0
        %1265 = vmatpush1.xpose.msra.mxu0 0.0
        %1266 = vmatprep.subr.mxu0 0.0
        %1267 = vmatpush1.xpose.msra.mxu0 0.0
        %1268 = vmatprep.subr.mxu0 0.0
        %1269 = vmatpush1.xpose.msra.mxu0 0.0
        %1270 = vmatprep.subr.mxu0 0.0
        %1271 = vmatpush1.xpose.msra.mxu0 0.0
        %1272 = vmatprep.subr.mxu0 0.0
        %1273 = vmatpush1.xpose.msra.mxu0 0.0
        %1274 = vmatprep.subr.mxu0 0.0
        %1275 = vmatpush1.xpose.msra.mxu0 0.0
        %1276 = vmatprep.subr.mxu0 0.0
        %1277 = vmatpush1.xpose.msra.mxu0 0.0
        %1278 = vmatprep.subr.mxu0 0.0
        %1279 = vmatpush1.xpose.msra.mxu0 0.0
        %1280 = vmatprep.subr.mxu0 0.0
        %1281 = vmatpush1.xpose.msra.mxu0 0.0
        %1282 = vmatprep.subr.mxu0 0.0
        %1283 = vmatpush1.xpose.msra.mxu0 0.0
        %1284 = vmatprep.subr.mxu0 0.0
        %1285 = vmatpush1.xpose.msra.mxu0 0.0
        %1286 = vmatprep.mubr.f32.mxu0 0.0
        %1287 = vmatmul.mubr.f32.gmra.mrb[0].mxu0 %v1218
        %v1288 = vpop.f32.mrb[0].mxu0
        %v1289 = vadd.f32 %v1216, %v1288
        %v1290 = vpop.f32.mrb[0].mxu0
        %1291 = vdwg.mxu0
        %v1292 = vmul.f32 %v1289, 0.35355338
        %v1293 = vsel %vm1012, -3.4028235e+38, %v1292
        %v1294 = vsel %vm810, %v1293, -inf
        %1295 = vmax.xlane.f32.xlu0 %v1294
        %v1296 = vpop.xlane.xlu0 %1295
        %v1297 = vsub.f32 %v1293, %v1296
        %v1298 = vmul.f32 %v1297, 1.442695
        %v1299 = vpow.pop %v1298
        %v1300 = vsel %vm810, %v1299, 0.0
        %1301 = vadd.xlane.f32.xlu0 %v1300
        %v1302 = vpop.xlane.xlu0 %1301
        %v1303 = vrcp.pop %v1302
        %v1304 = vmul.f32 %v1299, %v1303
        %v1305 = vsel %vm1012, 0.0, %v1304
        %1307 = vrot.lane.b32.xlu0 %v692, 120
        %v1308 = vpop.permute.xlu0 %1307
        %v1311 = vsel %vm810, %v1305, 0
        %1313 = vmatprep.subr.mxu0 0.0
        %1314 = vmatpush1.msra.mxu0 %v1308
        %1315 = vmatprep.subr.mxu0 0.0
        %1316 = vmatpush1.msra.mxu0 0.0
        %1317 = vmatprep.subr.mxu0 0.0
        %1318 = vmatpush1.msra.mxu0 0.0
        %1319 = vmatprep.subr.mxu0 0.0
        %1320 = vmatpush1.msra.mxu0 0.0
        %1321 = vmatprep.subr.mxu0 0.0
        %1322 = vmatpush1.msra.mxu0 0.0
        %1323 = vmatprep.subr.mxu0 0.0
        %1324 = vmatpush1.msra.mxu0 0.0
        %1325 = vmatprep.subr.mxu0 0.0
        %1326 = vmatpush1.msra.mxu0 0.0
        %1327 = vmatprep.subr.mxu0 0.0
        %1328 = vmatpush1.msra.mxu0 0.0
        %1329 = vmatprep.subr.mxu0 0.0
        %1330 = vmatpush1.msra.mxu0 0.0
        %1331 = vmatprep.subr.mxu0 0.0
        %1332 = vmatpush1.msra.mxu0 0.0
        %1333 = vmatprep.subr.mxu0 0.0
        %1334 = vmatpush1.msra.mxu0 0.0
        %1335 = vmatprep.subr.mxu0 0.0
        %1336 = vmatpush1.msra.mxu0 0.0
        %1337 = vmatprep.subr.mxu0 0.0
        %1338 = vmatpush1.msra.mxu0 0.0
        %1339 = vmatprep.subr.mxu0 0.0
        %1340 = vmatpush1.msra.mxu0 0.0
        %1341 = vmatprep.subr.mxu0 0.0
        %1342 = vmatpush1.msra.mxu0 0.0
        %1343 = vmatprep.subr.mxu0 0.0
        %1344 = vmatpush1.msra.mxu0 0.0
        %1345 = vmatprep.subr.mxu0 0.0
        %1346 = vmatpush1.msra.mxu0 0.0
        %1347 = vmatprep.subr.mxu0 0.0
        %1348 = vmatpush1.msra.mxu0 0.0
        %1349 = vmatprep.subr.mxu0 0.0
        %1350 = vmatpush1.msra.mxu0 0.0
        %1351 = vmatprep.subr.mxu0 0.0
        %1352 = vmatpush1.msra.mxu0 0.0
        %1353 = vmatprep.subr.mxu0 0.0
        %1354 = vmatpush1.msra.mxu0 0.0
        %1355 = vmatprep.subr.mxu0 0.0
        %1356 = vmatpush1.msra.mxu0 0.0
        %1357 = vmatprep.subr.mxu0 0.0
        %1358 = vmatpush1.msra.mxu0 0.0
        %1359 = vmatprep.subr.mxu0 0.0
        %1360 = vmatpush1.msra.mxu0 0.0
        %1361 = vmatprep.subr.mxu0 0.0
        %1362 = vmatpush1.msra.mxu0 0.0
        %1363 = vmatprep.subr.mxu0 0.0
        %1364 = vmatpush1.msra.mxu0 0.0
        %1365 = vmatprep.subr.mxu0 0.0
        %1366 = vmatpush1.msra.mxu0 0.0
        %1367 = vmatprep.subr.mxu0 0.0
        %1368 = vmatpush1.msra.mxu0 0.0
        %1369 = vmatprep.subr.mxu0 0.0
        %1370 = vmatpush1.msra.mxu0 0.0
        %1371 = vmatprep.subr.mxu0 0.0
        %1372 = vmatpush1.msra.mxu0 0.0
        %1373 = vmatprep.subr.mxu0 0.0
        %1374 = vmatpush1.msra.mxu0 0.0
        %1375 = vmatprep.subr.mxu0 0.0
        %1376 = vmatpush1.msra.mxu0 0.0
        %1377 = vmatprep.mubr.f32.mxu0 0.0
        %1378 = vmatmul.mubr.f32.gmra.mrb[0].mxu0 %v1311
        %v1379 = vpop.f32.mrb[0].mxu0
        %v1380 = vadd.f32 0.0, %v1379
        %v1381 = vpop.f32.mrb[0].mxu0
        %1382 = vdwg.mxu0
        %1383 = vrot.lane.b32.xlu0 %v807, 112
        %v1384 = vpop.permute.xlu0 %1383
        %1385 = vrot.lane.b32.xlu0 %v783, 112
        %v1386 = vpop.permute.xlu0 %1385
        %1387 = vrot.lane.b32.xlu0 %v788, 112
        %v1388 = vpop.permute.xlu0 %1387
        %v1389 = vsel %vm810, %v1384, 0
        %v1391 = vsel %vm810, %v1386, 0
        %v1393 = vsel %vm810, %v1388, 0
        %1395 = vmatprep.subr.mxu0 0.0
        %1396 = vmatpush1.xpose.msra.mxu0 %v1391
        %1397 = vmatprep.subr.mxu0 0.0
        %1398 = vmatpush1.xpose.msra.mxu0 %v1393
        %1399 = vmatprep.subr.mxu0 0.0
        %1400 = vmatpush1.xpose.msra.mxu0 0.0
        %1401 = vmatprep.subr.mxu0 0.0
        %1402 = vmatpush1.xpose.msra.mxu0 0.0
        %1403 = vmatprep.subr.mxu0 0.0
        %1404 = vmatpush1.xpose.msra.mxu0 0.0
        %1405 = vmatprep.subr.mxu0 0.0
        %1406 = vmatpush1.xpose.msra.mxu0 0.0
        %1407 = vmatprep.subr.mxu0 0.0
        %1408 = vmatpush1.xpose.msra.mxu0 0.0
        %1409 = vmatprep.subr.mxu0 0.0
        %1410 = vmatpush1.xpose.msra.mxu0 0.0
        %1411 = vmatprep.subr.mxu0 0.0
        %1412 = vmatpush1.xpose.msra.mxu0 0.0
        %1413 = vmatprep.subr.mxu0 0.0
        %1414 = vmatpush1.xpose.msra.mxu0 0.0
        %1415 = vmatprep.subr.mxu0 0.0
        %1416 = vmatpush1.xpose.msra.mxu0 0.0
        %1417 = vmatprep.subr.mxu0 0.0
        %1418 = vmatpush1.xpose.msra.mxu0 0.0
        %1419 = vmatprep.subr.mxu0 0.0
        %1420 = vmatpush1.xpose.msra.mxu0 0.0
        %1421 = vmatprep.subr.mxu0 0.0
        %1422 = vmatpush1.xpose.msra.mxu0 0.0
        %1423 = vmatprep.subr.mxu0 0.0
        %1424 = vmatpush1.xpose.msra.mxu0 0.0
        %1425 = vmatprep.subr.mxu0 0.0
        %1426 = vmatpush1.xpose.msra.mxu0 0.0
        %1427 = vmatprep.subr.mxu0 0.0
        %1428 = vmatpush1.xpose.msra.mxu0 0.0
        %1429 = vmatprep.subr.mxu0 0.0
        %1430 = vmatpush1.xpose.msra.mxu0 0.0
        %1431 = vmatprep.subr.mxu0 0.0
        %1432 = vmatpush1.xpose.msra.mxu0 0.0
        %1433 = vmatprep.subr.mxu0 0.0
        %1434 = vmatpush1.xpose.msra.mxu0 0.0
        %1435 = vmatprep.subr.mxu0 0.0
        %1436 = vmatpush1.xpose.msra.mxu0 0.0
        %1437 = vmatprep.subr.mxu0 0.0
        %1438 = vmatpush1.xpose.msra.mxu0 0.0
        %1439 = vmatprep.subr.mxu0 0.0
        %1440 = vmatpush1.xpose.msra.mxu0 0.0
        %1441 = vmatprep.subr.mxu0 0.0
        %1442 = vmatpush1.xpose.msra.mxu0 0.0
        %1443 = vmatprep.subr.mxu0 0.0
        %1444 = vmatpush1.xpose.msra.mxu0 0.0
        %1445 = vmatprep.subr.mxu0 0.0
        %1446 = vmatpush1.xpose.msra.mxu0 0.0
        %1447 = vmatprep.subr.mxu0 0.0
        %1448 = vmatpush1.xpose.msra.mxu0 0.0
        %1449 = vmatprep.subr.mxu0 0.0
        %1450 = vmatpush1.xpose.msra.mxu0 0.0
        %1451 = vmatprep.subr.mxu0 0.0
        %1452 = vmatpush1.xpose.msra.mxu0 0.0
        %1453 = vmatprep.subr.mxu0 0.0
        %1454 = vmatpush1.xpose.msra.mxu0 0.0
        %1455 = vmatprep.subr.mxu0 0.0
        %1456 = vmatpush1.xpose.msra.mxu0 0.0
        %1457 = vmatprep.subr.mxu0 0.0
        %1458 = vmatpush1.xpose.msra.mxu0 0.0
        %1459 = vmatprep.mubr.f32.mxu0 0.0
        %1460 = vmatmul.mubr.f32.gmra.mrb[0].mxu0 %v1389
        %v1461 = vpop.f32.mrb[0].mxu0
        %v1462 = vadd.f32 0.0, %v1461
        %v1463 = vpop.f32.mrb[0].mxu0
        %1464 = vdwg.mxu0
        %1466 = vrot.lane.b32.xlu0 %v1462, 1
        %v1467 = vpop.permute.xlu0 %1466
        %1469 = vrot.lane.b32.xlu0 %v1462, 2
        %v1470 = vpop.permute.xlu0 %1469
        %1472 = vrot.lane.b32.xlu0 %v1462, 3
        %v1473 = vpop.permute.xlu0 %1472
        %1475 = vrot.lane.b32.xlu0 %v1462, 4
        %v1476 = vpop.permute.xlu0 %1475
        %1478 = vrot.lane.b32.xlu0 %v1462, 5
        %v1479 = vpop.permute.xlu0 %1478
        %1481 = vrot.lane.b32.xlu0 %v1462, 6
        %v1482 = vpop.permute.xlu0 %1481
        %1484 = vrot.lane.b32.xlu0 %v1462, 7
        %v1485 = vpop.permute.xlu0 %1484
        %v1487 = vsel %vm912, %v1462, %v1467
        %v1488 = vsel %vm914, %v1487, %v1470
        %v1489 = vsel %vm916, %v1488, %v1473
        %v1490 = vsel %vm918, %v1489, %v1476
        %v1491 = vsel %vm920, %v1490, %v1479
        %v1492 = vsel %vm922, %v1491, %v1482
        %v1493 = vsel %vm924, %v1492, %v1485
        %1494 = vrot.lane.b32.xlu0 %v798, 112
        %v1495 = vpop.permute.xlu0 %1494
        %1496 = vrot.lane.b32.xlu0 %v606, 112
        %v1497 = vpop.permute.xlu0 %1496
        %1499 = vrot.lane.b32.xlu0 %v1493, 121
        %v1500 = vpop.permute.xlu0 %1499
        %v1502 = vsel %vm810, %v1495, 0
        %v1504 = vsel %vm810, %v1497, 0
        %1506 = vmatprep.subr.mxu0 0.0
        %1507 = vmatpush1.xpose.msra.mxu0 %v1504
        %1508 = vmatprep.subr.mxu0 0.0
        %1509 = vmatpush1.xpose.msra.mxu0 0.0
        %1510 = vmatprep.subr.mxu0 0.0
        %1511 = vmatpush1.xpose.msra.mxu0 0.0
        %1512 = vmatprep.subr.mxu0 0.0
        %1513 = vmatpush1.xpose.msra.mxu0 0.0
        %1514 = vmatprep.subr.mxu0 0.0
        %1515 = vmatpush1.xpose.msra.mxu0 0.0
        %1516 = vmatprep.subr.mxu0 0.0
        %1517 = vmatpush1.xpose.msra.mxu0 0.0
        %1518 = vmatprep.subr.mxu0 0.0
        %1519 = vmatpush1.xpose.msra.mxu0 0.0
        %1520 = vmatprep.subr.mxu0 0.0
        %1521 = vmatpush1.xpose.msra.mxu0 0.0
        %1522 = vmatprep.subr.mxu0 0.0
        %1523 = vmatpush1.xpose.msra.mxu0 0.0
        %1524 = vmatprep.subr.mxu0 0.0
        %1525 = vmatpush1.xpose.msra.mxu0 0.0
        %1526 = vmatprep.subr.mxu0 0.0
        %1527 = vmatpush1.xpose.msra.mxu0 0.0
        %1528 = vmatprep.subr.mxu0 0.0
        %1529 = vmatpush1.xpose.msra.mxu0 0.0
        %1530 = vmatprep.subr.mxu0 0.0
        %1531 = vmatpush1.xpose.msra.mxu0 0.0
        %1532 = vmatprep.subr.mxu0 0.0
        %1533 = vmatpush1.xpose.msra.mxu0 0.0
        %1534 = vmatprep.subr.mxu0 0.0
        %1535 = vmatpush1.xpose.msra.mxu0 0.0
        %1536 = vmatprep.subr.mxu0 0.0
        %1537 = vmatpush1.xpose.msra.mxu0 0.0
        %1538 = vmatprep.subr.mxu0 0.0
        %1539 = vmatpush1.xpose.msra.mxu0 0.0
        %1540 = vmatprep.subr.mxu0 0.0
        %1541 = vmatpush1.xpose.msra.mxu0 0.0
        %1542 = vmatprep.subr.mxu0 0.0
        %1543 = vmatpush1.xpose.msra.mxu0 0.0
        %1544 = vmatprep.subr.mxu0 0.0
        %1545 = vmatpush1.xpose.msra.mxu0 0.0
        %1546 = vmatprep.subr.mxu0 0.0
        %1547 = vmatpush1.xpose.msra.mxu0 0.0
        %1548 = vmatprep.subr.mxu0 0.0
        %1549 = vmatpush1.xpose.msra.mxu0 0.0
        %1550 = vmatprep.subr.mxu0 0.0
        %1551 = vmatpush1.xpose.msra.mxu0 0.0
        %1552 = vmatprep.subr.mxu0 0.0
        %1553 = vmatpush1.xpose.msra.mxu0 0.0
        %1554 = vmatprep.subr.mxu0 0.0
        %1555 = vmatpush1.xpose.msra.mxu0 0.0
        %1556 = vmatprep.subr.mxu0 0.0
        %1557 = vmatpush1.xpose.msra.mxu0 0.0
        %1558 = vmatprep.subr.mxu0 0.0
        %1559 = vmatpush1.xpose.msra.mxu0 0.0
        %1560 = vmatprep.subr.mxu0 0.0
        %1561 = vmatpush1.xpose.msra.mxu0 0.0
        %1562 = vmatprep.subr.mxu0 0.0
        %1563 = vmatpush1.xpose.msra.mxu0 0.0
        %1564 = vmatprep.subr.mxu0 0.0
        %1565 = vmatpush1.xpose.msra.mxu0 0.0
        %1566 = vmatprep.subr.mxu0 0.0
        %1567 = vmatpush1.xpose.msra.mxu0 0.0
        %1568 = vmatprep.subr.mxu0 0.0
        %1569 = vmatpush1.xpose.msra.mxu0 0.0
        %1570 = vmatprep.mubr.f32.mxu0 0.0
        %1571 = vmatmul.mubr.f32.gmra.mrb[0].mxu0 %v1502
        %v1572 = vpop.f32.mrb[0].mxu0
        %v1573 = vadd.f32 %v1500, %v1572
        %v1574 = vpop.f32.mrb[0].mxu0
        %1575 = vdwg.mxu0
        %v1576 = vmul.f32 %v1573, 0.35355338
        %v1577 = vsel %vm1012, -3.4028235e+38, %v1576
        %v1578 = vsel %vm810, %v1577, -inf
        %1579 = vmax.xlane.f32.xlu0 %v1578
        %v1580 = vpop.xlane.xlu0 %1579
        %v1581 = vsub.f32 %v1577, %v1580
        %v1582 = vmul.f32 %v1581, 1.442695
        %v1583 = vpow.pop %v1582
        %v1584 = vsel %vm810, %v1583, 0.0
        %1585 = vadd.xlane.f32.xlu0 %v1584
        %v1586 = vpop.xlane.xlu0 %1585
        %v1587 = vrcp.pop %v1586
        %v1588 = vmul.f32 %v1583, %v1587
        %v1589 = vsel %vm1012, 0.0, %v1588
        %1590 = vrot.lane.b32.xlu0 %v692, 112
        %v1591 = vpop.permute.xlu0 %1590
        %v1594 = vsel %vm810, %v1589, 0
        %1596 = vmatprep.subr.mxu0 0.0
        %1597 = vmatpush1.msra.mxu0 %v1591
        %1598 = vmatprep.subr.mxu0 0.0
        %1599 = vmatpush1.msra.mxu0 0.0
        %1600 = vmatprep.subr.mxu0 0.0
        %1601 = vmatpush1.msra.mxu0 0.0
        %1602 = vmatprep.subr.mxu0 0.0
        %1603 = vmatpush1.msra.mxu0 0.0
        %1604 = vmatprep.subr.mxu0 0.0
        %1605 = vmatpush1.msra.mxu0 0.0
        %1606 = vmatprep.subr.mxu0 0.0
        %1607 = vmatpush1.msra.mxu0 0.0
        %1608 = vmatprep.subr.mxu0 0.0
        %1609 = vmatpush1.msra.mxu0 0.0
        %1610 = vmatprep.subr.mxu0 0.0
        %1611 = vmatpush1.msra.mxu0 0.0
        %1612 = vmatprep.subr.mxu0 0.0
        %1613 = vmatpush1.msra.mxu0 0.0
        %1614 = vmatprep.subr.mxu0 0.0
        %1615 = vmatpush1.msra.mxu0 0.0
        %1616 = vmatprep.subr.mxu0 0.0
        %1617 = vmatpush1.msra.mxu0 0.0
        %1618 = vmatprep.subr.mxu0 0.0
        %1619 = vmatpush1.msra.mxu0 0.0
        %1620 = vmatprep.subr.mxu0 0.0
        %1621 = vmatpush1.msra.mxu0 0.0
        %1622 = vmatprep.subr.mxu0 0.0
        %1623 = vmatpush1.msra.mxu0 0.0
        %1624 = vmatprep.subr.mxu0 0.0
        %1625 = vmatpush1.msra.mxu0 0.0
        %1626 = vmatprep.subr.mxu0 0.0
        %1627 = vmatpush1.msra.mxu0 0.0
        %1628 = vmatprep.subr.mxu0 0.0
        %1629 = vmatpush1.msra.mxu0 0.0
        %1630 = vmatprep.subr.mxu0 0.0
        %1631 = vmatpush1.msra.mxu0 0.0
        %1632 = vmatprep.subr.mxu0 0.0
        %1633 = vmatpush1.msra.mxu0 0.0
        %1634 = vmatprep.subr.mxu0 0.0
        %1635 = vmatpush1.msra.mxu0 0.0
        %1636 = vmatprep.subr.mxu0 0.0
        %1637 = vmatpush1.msra.mxu0 0.0
        %1638 = vmatprep.subr.mxu0 0.0
        %1639 = vmatpush1.msra.mxu0 0.0
        %1640 = vmatprep.subr.mxu0 0.0
        %1641 = vmatpush1.msra.mxu0 0.0
        %1642 = vmatprep.subr.mxu0 0.0
        %1643 = vmatpush1.msra.mxu0 0.0
        %1644 = vmatprep.subr.mxu0 0.0
        %1645 = vmatpush1.msra.mxu0 0.0
        %1646 = vmatprep.subr.mxu0 0.0
        %1647 = vmatpush1.msra.mxu0 0.0
        %1648 = vmatprep.subr.mxu0 0.0
        %1649 = vmatpush1.msra.mxu0 0.0
        %1650 = vmatprep.subr.mxu0 0.0
        %1651 = vmatpush1.msra.mxu0 0.0
        %1652 = vmatprep.subr.mxu0 0.0
        %1653 = vmatpush1.msra.mxu0 0.0
        %1654 = vmatprep.subr.mxu0 0.0
        %1655 = vmatpush1.msra.mxu0 0.0
        %1656 = vmatprep.subr.mxu0 0.0
        %1657 = vmatpush1.msra.mxu0 0.0
        %1658 = vmatprep.subr.mxu0 0.0
        %1659 = vmatpush1.msra.mxu0 0.0
        %1660 = vmatprep.mubr.f32.mxu0 0.0
        %1661 = vmatmul.mubr.f32.gmra.mrb[0].mxu0 %v1594
        %v1662 = vpop.f32.mrb[0].mxu0
        %v1663 = vadd.f32 0.0, %v1662
        %v1664 = vpop.f32.mrb[0].mxu0
        %1665 = vdwg.mxu0
        %1666 = vrot.lane.b32.xlu0 %v807, 104
        %v1667 = vpop.permute.xlu0 %1666
        %1668 = vrot.lane.b32.xlu0 %v783, 104
        %v1669 = vpop.permute.xlu0 %1668
        %1670 = vrot.lane.b32.xlu0 %v788, 104
        %v1671 = vpop.permute.xlu0 %1670
        %v1672 = vsel %vm810, %v1667, 0
        %v1674 = vsel %vm810, %v1669, 0
        %v1676 = vsel %vm810, %v1671, 0
        %1678 = vmatprep.subr.mxu0 0.0
        %1679 = vmatpush1.xpose.msra.mxu0 %v1674
        %1680 = vmatprep.subr.mxu0 0.0
        %1681 = vmatpush1.xpose.msra.mxu0 %v1676
        %1682 = vmatprep.subr.mxu0 0.0
        %1683 = vmatpush1.xpose.msra.mxu0 0.0
        %1684 = vmatprep.subr.mxu0 0.0
        %1685 = vmatpush1.xpose.msra.mxu0 0.0
        %1686 = vmatprep.subr.mxu0 0.0
        %1687 = vmatpush1.xpose.msra.mxu0 0.0
        %1688 = vmatprep.subr.mxu0 0.0
        %1689 = vmatpush1.xpose.msra.mxu0 0.0
        %1690 = vmatprep.subr.mxu0 0.0
        %1691 = vmatpush1.xpose.msra.mxu0 0.0
        %1692 = vmatprep.subr.mxu0 0.0
        %1693 = vmatpush1.xpose.msra.mxu0 0.0
        %1694 = vmatprep.subr.mxu0 0.0
        %1695 = vmatpush1.xpose.msra.mxu0 0.0
        %1696 = vmatprep.subr.mxu0 0.0
        %1697 = vmatpush1.xpose.msra.mxu0 0.0
        %1698 = vmatprep.subr.mxu0 0.0
        %1699 = vmatpush1.xpose.msra.mxu0 0.0
        %1700 = vmatprep.subr.mxu0 0.0
        %1701 = vmatpush1.xpose.msra.mxu0 0.0
        %1702 = vmatprep.subr.mxu0 0.0
        %1703 = vmatpush1.xpose.msra.mxu0 0.0
        %1704 = vmatprep.subr.mxu0 0.0
        %1705 = vmatpush1.xpose.msra.mxu0 0.0
        %1706 = vmatprep.subr.mxu0 0.0
        %1707 = vmatpush1.xpose.msra.mxu0 0.0
        %1708 = vmatprep.subr.mxu0 0.0
        %1709 = vmatpush1.xpose.msra.mxu0 0.0
        %1710 = vmatprep.subr.mxu0 0.0
        %1711 = vmatpush1.xpose.msra.mxu0 0.0
        %1712 = vmatprep.subr.mxu0 0.0
        %1713 = vmatpush1.xpose.msra.mxu0 0.0
        %1714 = vmatprep.subr.mxu0 0.0
        %1715 = vmatpush1.xpose.msra.mxu0 0.0
        %1716 = vmatprep.subr.mxu0 0.0
        %1717 = vmatpush1.xpose.msra.mxu0 0.0
        %1718 = vmatprep.subr.mxu0 0.0
        %1719 = vmatpush1.xpose.msra.mxu0 0.0
        %1720 = vmatprep.subr.mxu0 0.0
        %1721 = vmatpush1.xpose.msra.mxu0 0.0
        %1722 = vmatprep.subr.mxu0 0.0
        %1723 = vmatpush1.xpose.msra.mxu0 0.0
        %1724 = vmatprep.subr.mxu0 0.0
        %1725 = vmatpush1.xpose.msra.mxu0 0.0
        %1726 = vmatprep.subr.mxu0 0.0
        %1727 = vmatpush1.xpose.msra.mxu0 0.0
        %1728 = vmatprep.subr.mxu0 0.0
        %1729 = vmatpush1.xpose.msra.mxu0 0.0
        %1730 = vmatprep.subr.mxu0 0.0
        %1731 = vmatpush1.xpose.msra.mxu0 0.0
        %1732 = vmatprep.subr.mxu0 0.0
        %1733 = vmatpush1.xpose.msra.mxu0 0.0
        %1734 = vmatprep.subr.mxu0 0.0
        %1735 = vmatpush1.xpose.msra.mxu0 0.0
        %1736 = vmatprep.subr.mxu0 0.0
        %1737 = vmatpush1.xpose.msra.mxu0 0.0
        %1738 = vmatprep.subr.mxu0 0.0
        %1739 = vmatpush1.xpose.msra.mxu0 0.0
        %1740 = vmatprep.subr.mxu0 0.0
        %1741 = vmatpush1.xpose.msra.mxu0 0.0
        %1742 = vmatprep.mubr.f32.mxu0 0.0
        %1743 = vmatmul.mubr.f32.gmra.mrb[0].mxu0 %v1672
        %v1744 = vpop.f32.mrb[0].mxu0
        %v1745 = vadd.f32 0.0, %v1744
        %v1746 = vpop.f32.mrb[0].mxu0
        %1747 = vdwg.mxu0
        %1749 = vrot.lane.b32.xlu0 %v1745, 1
        %v1750 = vpop.permute.xlu0 %1749
        %1752 = vrot.lane.b32.xlu0 %v1745, 2
        %v1753 = vpop.permute.xlu0 %1752
        %1755 = vrot.lane.b32.xlu0 %v1745, 3
        %v1756 = vpop.permute.xlu0 %1755
        %1758 = vrot.lane.b32.xlu0 %v1745, 4
        %v1759 = vpop.permute.xlu0 %1758
        %1761 = vrot.lane.b32.xlu0 %v1745, 5
        %v1762 = vpop.permute.xlu0 %1761
        %1764 = vrot.lane.b32.xlu0 %v1745, 6
        %v1765 = vpop.permute.xlu0 %1764
        %1767 = vrot.lane.b32.xlu0 %v1745, 7
        %v1768 = vpop.permute.xlu0 %1767
        %v1770 = vsel %vm912, %v1745, %v1750
        %v1771 = vsel %vm914, %v1770, %v1753
        %v1772 = vsel %vm916, %v1771, %v1756
        %v1773 = vsel %vm918, %v1772, %v1759
        %v1774 = vsel %vm920, %v1773, %v1762
        %v1775 = vsel %vm922, %v1774, %v1765
        %v1776 = vsel %vm924, %v1775, %v1768
        %1777 = vrot.lane.b32.xlu0 %v798, 104
        %v1778 = vpop.permute.xlu0 %1777
        %1779 = vrot.lane.b32.xlu0 %v606, 104
        %v1780 = vpop.permute.xlu0 %1779
        %1782 = vrot.lane.b32.xlu0 %v1776, 121
        %v1783 = vpop.permute.xlu0 %1782
        %v1785 = vsel %vm810, %v1778, 0
        %v1787 = vsel %vm810, %v1780, 0
        %1789 = vmatprep.subr.mxu0 0.0
        %1790 = vmatpush1.xpose.msra.mxu0 %v1787
        %1791 = vmatprep.subr.mxu0 0.0
        %1792 = vmatpush1.xpose.msra.mxu0 0.0
        %1793 = vmatprep.subr.mxu0 0.0
        %1794 = vmatpush1.xpose.msra.mxu0 0.0
        %1795 = vmatprep.subr.mxu0 0.0
        %1796 = vmatpush1.xpose.msra.mxu0 0.0
        %1797 = vmatprep.subr.mxu0 0.0
        %1798 = vmatpush1.xpose.msra.mxu0 0.0
        %1799 = vmatprep.subr.mxu0 0.0
        %1800 = vmatpush1.xpose.msra.mxu0 0.0
        %1801 = vmatprep.subr.mxu0 0.0
        %1802 = vmatpush1.xpose.msra.mxu0 0.0
        %1803 = vmatprep.subr.mxu0 0.0
        %1804 = vmatpush1.xpose.msra.mxu0 0.0
        %1805 = vmatprep.subr.mxu0 0.0
        %1806 = vmatpush1.xpose.msra.mxu0 0.0
        %1807 = vmatprep.subr.mxu0 0.0
        %1808 = vmatpush1.xpose.msra.mxu0 0.0
        %1809 = vmatprep.subr.mxu0 0.0
        %1810 = vmatpush1.xpose.msra.mxu0 0.0
        %1811 = vmatprep.subr.mxu0 0.0
        %1812 = vmatpush1.xpose.msra.mxu0 0.0
        %1813 = vmatprep.subr.mxu0 0.0
        %1814 = vmatpush1.xpose.msra.mxu0 0.0
        %1815 = vmatprep.subr.mxu0 0.0
        %1816 = vmatpush1.xpose.msra.mxu0 0.0
        %1817 = vmatprep.subr.mxu0 0.0
        %1818 = vmatpush1.xpose.msra.mxu0 0.0
        %1819 = vmatprep.subr.mxu0 0.0
        %1820 = vmatpush1.xpose.msra.mxu0 0.0
        %1821 = vmatprep.subr.mxu0 0.0
        %1822 = vmatpush1.xpose.msra.mxu0 0.0
        %1823 = vmatprep.subr.mxu0 0.0
        %1824 = vmatpush1.xpose.msra.mxu0 0.0
        %1825 = vmatprep.subr.mxu0 0.0
        %1826 = vmatpush1.xpose.msra.mxu0 0.0
        %1827 = vmatprep.subr.mxu0 0.0
        %1828 = vmatpush1.xpose.msra.mxu0 0.0
        %1829 = vmatprep.subr.mxu0 0.0
        %1830 = vmatpush1.xpose.msra.mxu0 0.0
        %1831 = vmatprep.subr.mxu0 0.0
        %1832 = vmatpush1.xpose.msra.mxu0 0.0
        %1833 = vmatprep.subr.mxu0 0.0
        %1834 = vmatpush1.xpose.msra.mxu0 0.0
        %1835 = vmatprep.subr.mxu0 0.0
        %1836 = vmatpush1.xpose.msra.mxu0 0.0
        %1837 = vmatprep.subr.mxu0 0.0
        %1838 = vmatpush1.xpose.msra.mxu0 0.0
        %1839 = vmatprep.subr.mxu0 0.0
        %1840 = vmatpush1.xpose.msra.mxu0 0.0
        %1841 = vmatprep.subr.mxu0 0.0
        %1842 = vmatpush1.xpose.msra.mxu0 0.0
        %1843 = vmatprep.subr.mxu0 0.0
        %1844 = vmatpush1.xpose.msra.mxu0 0.0
        %1845 = vmatprep.subr.mxu0 0.0
        %1846 = vmatpush1.xpose.msra.mxu0 0.0
        %1847 = vmatprep.subr.mxu0 0.0
        %1848 = vmatpush1.xpose.msra.mxu0 0.0
        %1849 = vmatprep.subr.mxu0 0.0
        %1850 = vmatpush1.xpose.msra.mxu0 0.0
        %1851 = vmatprep.subr.mxu0 0.0
        %1852 = vmatpush1.xpose.msra.mxu0 0.0
        %1853 = vmatprep.mubr.f32.mxu0 0.0
        %1854 = vmatmul.mubr.f32.gmra.mrb[0].mxu0 %v1785
        %v1855 = vpop.f32.mrb[0].mxu0
        %v1856 = vadd.f32 %v1783, %v1855
        %v1857 = vpop.f32.mrb[0].mxu0
        %1858 = vdwg.mxu0
        %v1859 = vmul.f32 %v1856, 0.35355338
        %v1860 = vsel %vm1012, -3.4028235e+38, %v1859
        %v1861 = vsel %vm810, %v1860, -inf
        %1862 = vmax.xlane.f32.xlu0 %v1861
        %v1863 = vpop.xlane.xlu0 %1862
        %v1864 = vsub.f32 %v1860, %v1863
        %v1865 = vmul.f32 %v1864, 1.442695
        %v1866 = vpow.pop %v1865
        %v1867 = vsel %vm810, %v1866, 0.0
        %1868 = vadd.xlane.f32.xlu0 %v1867
        %v1869 = vpop.xlane.xlu0 %1868
        %v1870 = vrcp.pop %v1869
        %v1871 = vmul.f32 %v1866, %v1870
        %v1872 = vsel %vm1012, 0.0, %v1871
        %1873 = vrot.lane.b32.xlu0 %v692, 104
        %v1874 = vpop.permute.xlu0 %1873
        %v1877 = vsel %vm810, %v1872, 0
        %1879 = vmatprep.subr.mxu0 0.0
        %1880 = vmatpush1.msra.mxu0 %v1874
        %1881 = vmatprep.subr.mxu0 0.0
        %1882 = vmatpush1.msra.mxu0 0.0
        %1883 = vmatprep.subr.mxu0 0.0
        %1884 = vmatpush1.msra.mxu0 0.0
        %1885 = vmatprep.subr.mxu0 0.0
        %1886 = vmatpush1.msra.mxu0 0.0
        %1887 = vmatprep.subr.mxu0 0.0
        %1888 = vmatpush1.msra.mxu0 0.0
        %1889 = vmatprep.subr.mxu0 0.0
        %1890 = vmatpush1.msra.mxu0 0.0
        %1891 = vmatprep.subr.mxu0 0.0
        %1892 = vmatpush1.msra.mxu0 0.0
        %1893 = vmatprep.subr.mxu0 0.0
        %1894 = vmatpush1.msra.mxu0 0.0
        %1895 = vmatprep.subr.mxu0 0.0
        %1896 = vmatpush1.msra.mxu0 0.0
        %1897 = vmatprep.subr.mxu0 0.0
        %1898 = vmatpush1.msra.mxu0 0.0
        %1899 = vmatprep.subr.mxu0 0.0
        %1900 = vmatpush1.msra.mxu0 0.0
        %1901 = vmatprep.subr.mxu0 0.0
        %1902 = vmatpush1.msra.mxu0 0.0
        %1903 = vmatprep.subr.mxu0 0.0
        %1904 = vmatpush1.msra.mxu0 0.0
        %1905 = vmatprep.subr.mxu0 0.0
        %1906 = vmatpush1.msra.mxu0 0.0
        %1907 = vmatprep.subr.mxu0 0.0
        %1908 = vmatpush1.msra.mxu0 0.0
        %1909 = vmatprep.subr.mxu0 0.0
        %1910 = vmatpush1.msra.mxu0 0.0
        %1911 = vmatprep.subr.mxu0 0.0
        %1912 = vmatpush1.msra.mxu0 0.0
        %1913 = vmatprep.subr.mxu0 0.0
        %1914 = vmatpush1.msra.mxu0 0.0
        %1915 = vmatprep.subr.mxu0 0.0
        %1916 = vmatpush1.msra.mxu0 0.0
        %1917 = vmatprep.subr.mxu0 0.0
        %1918 = vmatpush1.msra.mxu0 0.0
        %1919 = vmatprep.subr.mxu0 0.0
        %1920 = vmatpush1.msra.mxu0 0.0
        %1921 = vmatprep.subr.mxu0 0.0
        %1922 = vmatpush1.msra.mxu0 0.0
        %1923 = vmatprep.subr.mxu0 0.0
        %1924 = vmatpush1.msra.mxu0 0.0
        %1925 = vmatprep.subr.mxu0 0.0
        %1926 = vmatpush1.msra.mxu0 0.0
        %1927 = vmatprep.subr.mxu0 0.0
        %1928 = vmatpush1.msra.mxu0 0.0
        %1929 = vmatprep.subr.mxu0 0.0
        %1930 = vmatpush1.msra.mxu0 0.0
        %1931 = vmatprep.subr.mxu0 0.0
        %1932 = vmatpush1.msra.mxu0 0.0
        %1933 = vmatprep.subr.mxu0 0.0
        %1934 = vmatpush1.msra.mxu0 0.0
        %1935 = vmatprep.subr.mxu0 0.0
        %1936 = vmatpush1.msra.mxu0 0.0
        %1937 = vmatprep.subr.mxu0 0.0
        %1938 = vmatpush1.msra.mxu0 0.0
        %1939 = vmatprep.subr.mxu0 0.0
        %1940 = vmatpush1.msra.mxu0 0.0
        %1941 = vmatprep.subr.mxu0 0.0
        %1942 = vmatpush1.msra.mxu0 0.0
        %1943 = vmatprep.mubr.f32.mxu0 0.0
        %1944 = vmatmul.mubr.f32.gmra.mrb[0].mxu0 %v1877
        %v1945 = vpop.f32.mrb[0].mxu0
        %v1946 = vadd.f32 0.0, %v1945
        %v1947 = vpop.f32.mrb[0].mxu0
        %1948 = vdwg.mxu0
        %1950 = vrot.lane.b32.xlu0 %v1380, 8
        %v1951 = vpop.permute.xlu0 %1950
        %1954 = vrot.lane.b32.xlu0 %v1663, 16
        %v1955 = vpop.permute.xlu0 %1954
        %1958 = vrot.lane.b32.xlu0 %v1946, 24
        %v1959 = vpop.permute.xlu0 %1958
        %v1961 = vsel %vm810, %v1096, %v1951
        %vm1962 = vcmask 130048
        %v1963 = vsel %vm1962, %v1961, %v1955
        %vm1964 = vcmask 195584
        %v1965 = vsel %vm1964, %v1963, %v1959
        %s1966 = scalar_lea.vmem [#allocation8], 128
        %v1967 = vld [vmem:[%s1966] sm:$0xff]
        %v1968 = vld [vmem:[%s1966 + $0x8] sm:$0xff]
        %v1969 = vld [vmem:[%s1966 + $0x10] sm:$0xff]
        %v1970 = vld [vmem:[%s1966 + $0x18] sm:$0xff]
        %s1971 = scalar_lea.vmem [#allocation10], 4
        %v1972 = vld [vmem:[%s1971] sm:$0x1]
        %v1974 = vlaneseq
        %v1975 = vshrl.u32 %v1974, 7
        %v1976 = vsub.s32 0, %v1975
        %v1977 = vrot.slane %v1972, %v1976
        %v1980 = vsel %vm449, %v1965, 0
        %1982 = vmatprep.subr.mxu0 0.0
        %1983 = vmatpush1.msra.mxu0 %v1967
        %1984 = vmatprep.subr.mxu0 0.0
        %1985 = vmatpush1.msra.mxu0 %v1968
        %1986 = vmatprep.subr.mxu0 0.0
        %1987 = vmatpush1.msra.mxu0 %v1969
        %1988 = vmatprep.subr.mxu0 0.0
        %1989 = vmatpush1.msra.mxu0 %v1970
        %1990 = vmatprep.subr.mxu0 0.0
        %1991 = vmatpush1.msra.mxu0 0.0
        %1992 = vmatprep.subr.mxu0 0.0
        %1993 = vmatpush1.msra.mxu0 0.0
        %1994 = vmatprep.subr.mxu0 0.0
        %1995 = vmatpush1.msra.mxu0 0.0
        %1996 = vmatprep.subr.mxu0 0.0
        %1997 = vmatpush1.msra.mxu0 0.0
        %1998 = vmatprep.subr.mxu0 0.0
        %1999 = vmatpush1.msra.mxu0 0.0
        %2000 = vmatprep.subr.mxu0 0.0
        %2001 = vmatpush1.msra.mxu0 0.0
        %2002 = vmatprep.subr.mxu0 0.0
        %2003 = vmatpush1.msra.mxu0 0.0
        %2004 = vmatprep.subr.mxu0 0.0
        %2005 = vmatpush1.msra.mxu0 0.0
        %2006 = vmatprep.subr.mxu0 0.0
        %2007 = vmatpush1.msra.mxu0 0.0
        %2008 = vmatprep.subr.mxu0 0.0
        %2009 = vmatpush1.msra.mxu0 0.0
        %2010 = vmatprep.subr.mxu0 0.0
        %2011 = vmatpush1.msra.mxu0 0.0
        %2012 = vmatprep.subr.mxu0 0.0
        %2013 = vmatpush1.msra.mxu0 0.0
        %2014 = vmatprep.subr.mxu0 0.0
        %2015 = vmatpush1.msra.mxu0 0.0
        %2016 = vmatprep.subr.mxu0 0.0
        %2017 = vmatpush1.msra.mxu0 0.0
        %2018 = vmatprep.subr.mxu0 0.0
        %2019 = vmatpush1.msra.mxu0 0.0
        %2020 = vmatprep.subr.mxu0 0.0
        %2021 = vmatpush1.msra.mxu0 0.0
        %2022 = vmatprep.subr.mxu0 0.0
        %2023 = vmatpush1.msra.mxu0 0.0
        %2024 = vmatprep.subr.mxu0 0.0
        %2025 = vmatpush1.msra.mxu0 0.0
        %2026 = vmatprep.subr.mxu0 0.0
        %2027 = vmatpush1.msra.mxu0 0.0
        %2028 = vmatprep.subr.mxu0 0.0
        %2029 = vmatpush1.msra.mxu0 0.0
        %2030 = vmatprep.subr.mxu0 0.0
        %2031 = vmatpush1.msra.mxu0 0.0
        %2032 = vmatprep.subr.mxu0 0.0
        %2033 = vmatpush1.msra.mxu0 0.0
        %2034 = vmatprep.subr.mxu0 0.0
        %2035 = vmatpush1.msra.mxu0 0.0
        %2036 = vmatprep.subr.mxu0 0.0
        %2037 = vmatpush1.msra.mxu0 0.0
        %2038 = vmatprep.subr.mxu0 0.0
        %2039 = vmatpush1.msra.mxu0 0.0
        %2040 = vmatprep.subr.mxu0 0.0
        %2041 = vmatpush1.msra.mxu0 0.0
        %2042 = vmatprep.subr.mxu0 0.0
        %2043 = vmatpush1.msra.mxu0 0.0
        %2044 = vmatprep.subr.mxu0 0.0
        %2045 = vmatpush1.msra.mxu0 0.0
        %2046 = vmatprep.mubr.f32.mxu0 0.0
        %2047 = vmatmul.mubr.f32.gmra.mrb[0].mxu0 %v1980
        %v2048 = vpop.f32.mrb[0].mxu0
        %v2049 = vadd.f32 %v1977, %v2048
        %v2050 = vpop.f32.mrb[0].mxu0
        %2051 = vdwg.mxu0
        %2052 = vst.msk [vmem:[%s431] sm:$0xff] %vm449, %v2049
        %s2053 = sand.u32 %s225, 1
        %s2054 = scalar_lea.sflag [#allocation4], %s2053
        %s2055 = sand.u32 %s225, 1
        %s2056 = smul.addr %s2055, 8
        %s2057 = scalar_lea.vmem [#allocation11], %s2056
        // Predicated region
        $region73: #{rel_block_mha_forward.1} parent=51 // pred_check
          %p2058 = pneg %p235
        $region74: #{rel_block_mha_forward.1} parent=51 // pred_check_branch
          %2060 = sbr.rel (%p2058) target = $region76
        $region75: #{rel_block_mha_forward.1} parent=51 // pred_region
          %s2062 = ssub.s32 128, 128
          %2063 = vsyncadd %s2054, %s2062
          %s2064 = smul.addr %s29, 128
          %s2065 = scalar_lea.hbm %s8, %s2064
          %s2067 = sshll.u32 %s2057, 4
          %s2068 = int_to_ptr.vmem [resolvable:$true] %s2067
          %2070 = dma.vmem_to_hbm [thread:$0]  %s2068, 128, %s2065, %s2054
        $region76: #{rel_block_mha_forward.1} parent=51 // pred_fallthru
          _
      $region52: #{rel_block_mha_forward.1} parent=5 // pred_fallthru
        _
      %p2071 = scmp.le.s32.totalorder 2, %s24
      // Predicated region
      $region77: #{rel_block_mha_forward.1} parent=5 // pred_check
        %p2072 = pneg %p2071
      $region78: #{rel_block_mha_forward.1} parent=5 // pred_check_branch
        %2074 = sbr.rel (%p2072) target = $region80
      $region79: #{rel_block_mha_forward.1} parent=5 // pred_region
        %s2075 = ssub.s32 %s24, 2
        // Predicated region
        $region81: #{rel_block_mha_forward.1} parent=79 // pred_check
          %p2076 = pneg %p241
        $region82: #{rel_block_mha_forward.1} parent=79 // pred_check_branch
          %2078 = sbr.rel (%p2076) target = $region84
        $region83: #{rel_block_mha_forward.1} parent=79 // pred_region
          %s2079 = sand.u32 %s226, 1
          %s2080 = scalar_lea.sflag [#allocation4], %s2079
          %s2081 = sand.u32 %s226, 1
          %s2082 = smul.addr %s2081, 8
          %s2083 = scalar_lea.vmem [#allocation11], %s2082
          %2084 = dma.done %s2080, 128
        $region84: #{rel_block_mha_forward.1} parent=79 // pred_fallthru
          _
      $region80: #{rel_block_mha_forward.1} parent=5 // pred_fallthru
        _
    $region6: #{rel_block_mha_forward.1} parent=1 // loop_footer
      %s28 = sadd.s32 1, %s24
    $region7: #{rel_block_mha_forward.1} parent=1 // loop_footer_branch
      %23 = sbr.rel target = $region3
    $region8: #{rel_block_mha_forward.1} parent=1 // loop_exit
      _
    %2085 = vsyncpa [#allocation3], 1
    %s2086 = scalar_lea.sflag [#allocation3], 1
    %2087 = vsyncpa %s2086, 1
    %2088 = vsyncpa [#allocation6], 1
    %s2089 = scalar_lea.sflag [#allocation6], 1
    %2090 = vsyncpa %s2089, 1
    %2091 = vsyncpa [#allocation9], 1
    %2092 = vsyncpa [#allocation4], 1
    %s2093 = scalar_lea.sflag [#allocation4], 1
    %2094 = vsyncpa %s2093, 1

</llo_original>
